<compile_context>
chip_gen: v6e
topology: v6e:2x2x1
jax: 0.10.0
libtpu: 0.0.40
codegen_flags: <defaults>
</compile_context>

<pallas_src>
import math

import jax
import jax.numpy as jnp
from jax.experimental import pallas as pl
from jax.experimental.pallas import tpu as pltpu


# ---------------------------------------------------------------------------
# Configuration (small, consistent with the module's __init__)
# ---------------------------------------------------------------------------
N_ITEM = 32
N_CATE = 8
DIMS = [64, 32]
DIM_STEP = 4
BATCH = 512          # batch lives on the LANE axis -> keep it a multiple of 128


# ---------------------------------------------------------------------------
# Deterministic parameter init (PyTorch-Linear-style uniform(+-1/sqrt(fan_in)))
# ---------------------------------------------------------------------------
def _linear_params(key, d_in, d_out):
    k_w, k_b = jax.random.split(key)
    bound = 1.0 / math.sqrt(d_in)
    w = jax.random.uniform(k_w, (d_in, d_out), jnp.float32, -bound, bound)
    b = jax.random.uniform(k_b, (1, d_out), jnp.float32, -bound, bound)
    return w, b


def init_params(key, n_item, n_cate, dims, dim_step):
    n_layers = len(dims)
    cond_dim = dims[-1] // 4
    n_proj = n_layers - 1

    keys = iter(jax.random.split(key, 64))
    flat = []

    # cate_embedding.weight : [n_cate, cond_dim]
    flat.append(jax.random.normal(next(keys), (n_cate, cond_dim), jnp.float32))

    # proj_emb: Linear(cond_dim -> dim//2 - dim//4) for dims[:-1]
    for d in dims[:-1]:
        w, b = _linear_params(next(keys), cond_dim, d // 2 - d // 4)
        flat += [w, b]

    # encoder_ind: Linear(in -> dim//2) + Tanh
    ind_in = [n_item + dim_step] + [d // 2 for d in dims[:-1]]
    ind_out = [d // 2 for d in dims]
    for d_in, d_out in zip(ind_in, ind_out):
        w, b = _linear_params(next(keys), d_in, d_out)
        flat += [w, b]

    # encoder_cate: Linear(in -> dim//2 - dim//4) + Tanh
    cate_in = [n_item + dim_step] + [d // 2 for d in dims[:-1]]
    cate_out = [d // 2 - d // 4 for d in dims]
    for d_in, d_out in zip(cate_in, cate_out):
        w, b = _linear_params(next(keys), d_in, d_out)
        flat += [w, b]

    # decoder
    dec_in = list(dims[::-1])
    dec_out = [d - d // 4 for d in dec_in[1:]] + [n_item]
    for d_in, d_out in zip(dec_in, dec_out):
        w, b = _linear_params(next(keys), d_in, d_out)
        flat += [w, b]

    assert n_proj * 2 + 1 + n_layers * 6 == len(flat)
    return flat


# ---------------------------------------------------------------------------
# Host-side packing: every parameter stored TRANSPOSED ([d_out, d_in] weights,
# [d_out, 1] biases) into a single 8-row-aligned, 128-lane slab.
# ---------------------------------------------------------------------------
def _plan_and_pack(flat_params, dims, n_item, n_cate, dim_step, dtype):
    n_layers = len(dims)
    cond_dim = dims[-1] // 4
    cate_out = [d // 2 - d // 4 for d in dims]
    n_proj = n_layers - 1

    # The original module only works when the last cate-encoder width equals
    # cond_dim (otherwise it would index a proj layer that does not exist).
    assert cate_out[-1] == cond_dim, \
        "dims[-1] must satisfy dims[-1]//2 - dims[-1]//4 == dims[-1]//4"

    it = iter(flat_params)
    emb_w = next(it)
    proj = [(next(it), next(it)) for _ in range(n_proj)]
    ei = [(next(it), next(it)) for _ in range(n_layers)]
    ec = [(next(it), next(it)) for _ in range(n_layers)]
    dec = [(next(it), next(it)) for _ in range(n_layers)]

    use_proj = [cate_out[i] != cond_dim for i in range(n_layers)]

    named = [("emb_w", emb_w.T)]                              # [cond_dim, n_cate]
    for j in range(n_proj):
        named += [(f"proj_w{j}", proj[j][0].T),               # [out, cond_dim]
                  (f"proj_b{j}", proj[j][1].T)]               # [out, 1]
    for i in range(n_layers):
        named += [(f"ei_w{i}", ei[i][0].T), (f"ei_b{i}", ei[i][1].T),
                  (f"ec_w{i}", ec[i][0].T), (f"ec_b{i}", ec[i][1].T)]
    for m in range(n_layers):
        named += [(f"dec_w{m}", dec[m][0].T), (f"dec_b{m}", dec[m][1].T)]

    offsets = {}
    row, max_c = 0, 0
    for name, a in named:
        r, c = a.shape
        offsets[name] = (row, r, c)
        row += -(-r // 8) * 8                                 # 8-row aligned
        max_c = max(max_c, c)
    rows = -(-row // 8) * 8
    cols = -(-max(max_c, 128) // 128) * 128                   # lane-dense slab

    slab = jnp.zeros((rows, cols), dtype)
    for name, a in named:
        o, r, c = offsets[name]
        slab = slab.at[o:o + r, :c].set(a.astype(dtype))

    meta = dict(n_layers=n_layers, n_proj=n_proj, use_proj=use_proj)
    return slab, offsets, meta


def _num_batch_tiles():
    """2 'parallel' batch tiles on dual-TensorCore chips (v7x); 1 elsewhere."""
    try:
        kind = jax.devices()[0].device_kind.lower()
    except Exception:
        return 1
    return 2 if "v7" in kind else 1


# ---------------------------------------------------------------------------
# Pallas kernel + wrapper
# ---------------------------------------------------------------------------
def build_autorec_forward(flat_params, dims, n_item, n_cate, dim_step,
                          batch_tiles=None, use_bf16=False):
    # use_bf16=True stores the weight slab in bf16 and feeds bf16 to the MXU
    # (f32 accumulation, tanh/bias stay f32) — recommended on v6e/v7x.
    slab_dtype = jnp.bfloat16 if use_bf16 else jnp.float32
    slab, offsets, meta = _plan_and_pack(flat_params, dims, n_item, n_cate,
                                         dim_step, slab_dtype)
    n_layers = meta["n_layers"]
    n_proj = meta["n_proj"]
    use_proj = meta["use_proj"]
    d_in = n_item + dim_step
    R, C = slab.shape
    if batch_tiles is None:
        batch_tiles = _num_batch_tiles()

    def kernel(x_ref, p_ref, slab_ref, out_ref):
        def rd(name):                        # static slice of the param slab
            o, r, c = offsets[name]
            return slab_ref[o:o + r, :c]

        def dot(w, a):                       # W^T @ X with f32 accumulation
            if use_bf16:
                a = a.astype(jnp.bfloat16)
            return jnp.dot(w, a, preferred_element_type=jnp.float32)

        # category-preference embedding (row mask already folded into p)
        emb = dot(rd("emb_w"), p_ref[...])                    # [cond_dim, tb]

        # each distinct proj_emb[j](emb_pref) computed once, reused enc + dec
        projP = [dot(rd(f"proj_w{j}"), emb) + rd(f"proj_b{j}")
                 for j in range(n_proj)]
        enc_proj = [projP[i] if use_proj[i] else emb for i in range(n_layers)]

        # --- encoder: two small matmuls per layer; feature concats are
        #     8-aligned sublane concats (feature axis == sublane axis) -------
        xv = x_ref[...]
        z_in, h_in = xv, xv
        for i in range(n_layers):
            z = jnp.tanh(dot(rd(f"ei_w{i}"), z_in) + rd(f"ei_b{i}"))
            h = jnp.tanh(dot(rd(f"ec_w{i}"), h_in) + rd(f"ec_b{i}"))
            z_in = z
            h_in = jnp.concatenate([h, enc_proj[i]], axis=0)

        # --- decoder --------------------------------------------------------
        lat = jnp.concatenate([z_in, h_in], axis=0)           # [dims[-1], tb]
        for m in range(n_layers):
            acc = dot(rd(f"dec_w{m}"), lat) + rd(f"dec_b{m}")
            if m < n_layers - 1:
                lat = jnp.concatenate([jnp.tanh(acc), projP[n_proj - 1 - m]],
                                      axis=0)
            else:
                out_ref[...] = acc                            # [n_item, tb]

    @jax.jit
    def forward(x_t, probs, probs_mask, slab_in):
        B = x_t.shape[0]
        nt = batch_tiles if (batch_tiles > 0 and B % (128 * batch_tiles) == 0) \
            else 1
        tb = B // nt

        # Fold the row mask into probs: (probs*keep) @ W == (probs @ W) * keep.
        keep = 1.0 - probs_mask.astype(jnp.float32)
        p_T = (probs * keep[:, None]).T                        # [n_cate, B]
        x_T = x_t.T                                            # [d_in, B]

        out_T = pl.pallas_call(
            kernel,
            out_shape=jax.ShapeDtypeStruct((n_item, B), jnp.float32),
            grid=(nt,),
            in_specs=[
                pl.BlockSpec((d_in, tb), lambda i: (0, i)),
                pl.BlockSpec((n_cate, tb), lambda i: (0, i)),
                pl.BlockSpec((R, C), lambda i: (0, 0)),        # whole param slab
            ],
            out_specs=pl.BlockSpec((n_item, tb), lambda i: (0, i)),
            compiler_params=pltpu.CompilerParams(
                dimension_semantics=("parallel",)),
        )(x_T, p_T, slab_in)
        return out_T.T                                         # [B, n_item]

    return slab, forward


# ---------------------------------------------------------------------------
# Pure-JAX reference (original, un-restructured math) for correctness check
# ---------------------------------------------------------------------------
def reference_forward(x_t, probs, probs_mask, flat_params, dims, n_item):
    n_layers = len(dims)
    cond_dim = dims[-1] // 4
    half_dims = [d // 2 for d in dims]
    cate_out_dims = [d // 2 - d // 4 for d in dims]
    n_proj = n_layers - 1

    it = iter(flat_params)
    emb_w = next(it)
    proj = [(next(it), next(it)) for _ in range(n_proj)]
    ei = [(next(it), next(it)) for _ in range(n_layers)]
    ec = [(next(it), next(it)) for _ in range(n_layers)]
    dec = [(next(it), next(it)) for _ in range(n_layers)]

    emb_pref = probs @ emb_w
    emb_pref = jnp.where(probs_mask.reshape(-1, 1) == 1, 0.0, emb_pref)

    lz, lh = x_t, x_t
    for i in range(n_layers):
        lz = jnp.tanh(lz @ ei[i][0] + ei[i][1])
        lh = jnp.tanh(lh @ ec[i][0] + ec[i][1])
        p = emb_pref if cate_out_dims[i] == cond_dim \
            else emb_pref @ proj[i][0] + proj[i][1]
        lat = jnp.concatenate([lz, lh, p], axis=-1)
        lz, lh = lat[:, :half_dims[i]], lat[:, half_dims[i]:]
    lat = jnp.concatenate([lz, lh], axis=-1)

    for i in range(n_layers - 1):
        lat = jnp.tanh(lat @ dec[i][0] + dec[i][1])
        j = n_proj - 1 - i
        lat = jnp.concatenate([lat, emb_pref @ proj[j][0] + proj[j][1]], axis=-1)
    return lat @ dec[-1][0] + dec[-1][1]


# ---------------------------------------------------------------------------
if __name__ == "__main__":
    key = jax.random.PRNGKey(0)
    k_p, k_x, k_pr, k_m = jax.random.split(key, 4)

    flat_params = init_params(k_p, N_ITEM, N_CATE, DIMS, DIM_STEP)

    x_t = jax.random.normal(k_x, (BATCH, N_ITEM + DIM_STEP), jnp.float32)
    probs = jax.nn.softmax(jax.random.normal(k_pr, (BATCH, N_CATE)), axis=-1)
    probs_mask = (jax.random.uniform(k_m, (BATCH,)) < 0.3).astype(jnp.int32)

    slab, forward = build_autorec_forward(flat_params, DIMS, N_ITEM, N_CATE,
                                          DIM_STEP)

    out = jax.block_until_ready(forward(x_t, probs, probs_mask, slab))

    ref = reference_forward(x_t, probs, probs_mask, flat_params, DIMS, N_ITEM)
    assert out.shape == (BATCH, N_ITEM)
    assert jnp.allclose(out, ref, atol=1e-3, rtol=1e-3), \
        "kernel mismatch vs reference"

    print("KERNEL_OK")
</pallas_src>

<mosaic_0001>
module attributes {stable_mosaic.version = 11 : i64} {
  func.func @kernel(%arg0: i32, %arg1: memref<36x512xf32, #tpu.memory_space<vmem>>, %arg2: memref<8x512xf32, #tpu.memory_space<vmem>>, %arg3: memref<344x128xf32, #tpu.memory_space<vmem>>, %arg4: memref<32x512xf32, #tpu.memory_space<vmem>>) attributes {dimension_semantics = [#tpu.dimension_semantics<parallel>], iteration_bounds = array<i64: 1>, scalar_prefetch = 0 : i64, scratch_operands = 0 : i64, tpu.core_type = #tpu.core_type<tc>, window_params = [{transform_indices = @transform_0, window_bounds = array<i64: 36, 512>}, {transform_indices = @transform_1, window_bounds = array<i64: 8, 512>}, {pipeline_mode = #tpu.pipeline_mode<synchronous>, transform_indices = @transform_2, window_bounds = array<i64: 344, 128>}, {transform_indices = @transform_3, window_bounds = array<i64: 32, 512>}]} {
    %c0 = arith.constant 0 : index
    %c0_0 = arith.constant 0 : index
    %0 = vector.load %arg3[%c0, %c0_0] : memref<344x128xf32, #tpu.memory_space<vmem>>, vector<8x8xf32>
    %c0_1 = arith.constant 0 : index
    %c0_2 = arith.constant 0 : index
    %1 = vector.load %arg2[%c0_1, %c0_2] : memref<8x512xf32, #tpu.memory_space<vmem>>, vector<8x512xf32>
    %cst = arith.constant dense<0.000000e+00> : vector<8x512xf32>
    %2 = tpu.matmul %0, %1, %cst {dimension_numbers = #tpu.dot_dimension_numbers<[1], [0], [0], [1], [0, 0, 1, 1], [], []>} : vector<8x8xf32>, vector<8x512xf32>, vector<8x512xf32> -> vector<8x512xf32>
    %c8 = arith.constant 8 : index
    %c0_3 = arith.constant 0 : index
    %3 = vector.load %arg3[%c8, %c0_3] : memref<344x128xf32, #tpu.memory_space<vmem>>, vector<16x8xf32>
    %cst_4 = arith.constant dense<0.000000e+00> : vector<16x512xf32>
    %4 = tpu.matmul %3, %2, %cst_4 {dimension_numbers = #tpu.dot_dimension_numbers<[1], [0], [0], [1], [0, 0, 1, 1], [], []>} : vector<16x8xf32>, vector<8x512xf32>, vector<16x512xf32> -> vector<16x512xf32>
    %c24 = arith.constant 24 : index
    %c0_5 = arith.constant 0 : index
    %5 = vector.load %arg3[%c24, %c0_5] : memref<344x128xf32, #tpu.memory_space<vmem>>, vector<16x1xf32>
    %6 = vector.broadcast %5 : vector<16x1xf32> to vector<16x512xf32>
    %7 = arith.addf %4, %6 : vector<16x512xf32>
    %c0_6 = arith.constant 0 : index
    %c0_7 = arith.constant 0 : index
    %8 = vector.load %arg1[%c0_6, %c0_7] : memref<36x512xf32, #tpu.memory_space<vmem>>, vector<36x512xf32>
    %c40 = arith.constant 40 : index
    %c0_8 = arith.constant 0 : index
    %9 = vector.load %arg3[%c40, %c0_8] : memref<344x128xf32, #tpu.memory_space<vmem>>, vector<32x36xf32>
    %cst_9 = arith.constant dense<0.000000e+00> : vector<32x512xf32>
    %10 = tpu.matmul %9, %8, %cst_9 {dimension_numbers = #tpu.dot_dimension_numbers<[1], [0], [0], [1], [0, 0, 1, 1], [], []>} : vector<32x36xf32>, vector<36x512xf32>, vector<32x512xf32> -> vector<32x512xf32>
    %c72 = arith.constant 72 : index
    %c0_10 = arith.constant 0 : index
    %11 = vector.load %arg3[%c72, %c0_10] : memref<344x128xf32, #tpu.memory_space<vmem>>, vector<32x1xf32>
    %12 = vector.broadcast %11 : vector<32x1xf32> to vector<32x512xf32>
    %13 = arith.addf %10, %12 : vector<32x512xf32>
    %14 = math.tanh %13 : vector<32x512xf32>
    %c104 = arith.constant 104 : index
    %c0_11 = arith.constant 0 : index
    %15 = vector.load %arg3[%c104, %c0_11] : memref<344x128xf32, #tpu.memory_space<vmem>>, vector<16x36xf32>
    %cst_12 = arith.constant dense<0.000000e+00> : vector<16x512xf32>
    %16 = tpu.matmul %15, %8, %cst_12 {dimension_numbers = #tpu.dot_dimension_numbers<[1], [0], [0], [1], [0, 0, 1, 1], [], []>} : vector<16x36xf32>, vector<36x512xf32>, vector<16x512xf32> -> vector<16x512xf32>
    %c120 = arith.constant 120 : index
    %c0_13 = arith.constant 0 : index
    %17 = vector.load %arg3[%c120, %c0_13] : memref<344x128xf32, #tpu.memory_space<vmem>>, vector<16x1xf32>
    %18 = vector.broadcast %17 : vector<16x1xf32> to vector<16x512xf32>
    %19 = arith.addf %16, %18 : vector<16x512xf32>
    %20 = math.tanh %19 : vector<16x512xf32>
    %21 = tpu.concatenate %20, %7 in 0 : vector<16x512xf32>, vector<16x512xf32> -> vector<32x512xf32>
    %c136 = arith.constant 136 : index
    %c0_14 = arith.constant 0 : index
    %22 = vector.load %arg3[%c136, %c0_14] : memref<344x128xf32, #tpu.memory_space<vmem>>, vector<16x32xf32>
    %cst_15 = arith.constant dense<0.000000e+00> : vector<16x512xf32>
    %23 = tpu.matmul %22, %14, %cst_15 {dimension_numbers = #tpu.dot_dimension_numbers<[1], [0], [0], [1], [0, 0, 1, 1], [], []>} : vector<16x32xf32>, vector<32x512xf32>, vector<16x512xf32> -> vector<16x512xf32>
    %c152 = arith.constant 152 : index
    %c0_16 = arith.constant 0 : index
    %24 = vector.load %arg3[%c152, %c0_16] : memref<344x128xf32, #tpu.memory_space<vmem>>, vector<16x1xf32>
    %25 = vector.broadcast %24 : vector<16x1xf32> to vector<16x512xf32>
    %26 = arith.addf %23, %25 : vector<16x512xf32>
    %27 = math.tanh %26 : vector<16x512xf32>
    %c168 = arith.constant 168 : index
    %c0_17 = arith.constant 0 : index
    %28 = vector.load %arg3[%c168, %c0_17] : memref<344x128xf32, #tpu.memory_space<vmem>>, vector<8x32xf32>
    %cst_18 = arith.constant dense<0.000000e+00> : vector<8x512xf32>
    %29 = tpu.matmul %28, %21, %cst_18 {dimension_numbers = #tpu.dot_dimension_numbers<[1], [0], [0], [1], [0, 0, 1, 1], [], []>} : vector<8x32xf32>, vector<32x512xf32>, vector<8x512xf32> -> vector<8x512xf32>
    %c176 = arith.constant 176 : index
    %c0_19 = arith.constant 0 : index
    %30 = vector.load %arg3[%c176, %c0_19] : memref<344x128xf32, #tpu.memory_space<vmem>>, vector<8x1xf32>
    %31 = vector.broadcast %30 : vector<8x1xf32> to vector<8x512xf32>
    %32 = arith.addf %29, %31 : vector<8x512xf32>
    %33 = math.tanh %32 : vector<8x512xf32>
    %34 = tpu.concatenate %33, %2 in 0 : vector<8x512xf32>, vector<8x512xf32> -> vector<16x512xf32>
    %35 = tpu.concatenate %27, %34 in 0 : vector<16x512xf32>, vector<16x512xf32> -> vector<32x512xf32>
    %c184 = arith.constant 184 : index
    %c0_20 = arith.constant 0 : index
    %36 = vector.load %arg3[%c184, %c0_20] : memref<344x128xf32, #tpu.memory_space<vmem>>, vector<48x32xf32>
    %cst_21 = arith.constant dense<0.000000e+00> : vector<48x512xf32>
    %37 = tpu.matmul %36, %35, %cst_21 {dimension_numbers = #tpu.dot_dimension_numbers<[1], [0], [0], [1], [0, 0, 1, 1], [], []>} : vector<48x32xf32>, vector<32x512xf32>, vector<48x512xf32> -> vector<48x512xf32>
    %c232 = arith.constant 232 : index
    %c0_22 = arith.constant 0 : index
    %38 = vector.load %arg3[%c232, %c0_22] : memref<344x128xf32, #tpu.memory_space<vmem>>, vector<48x1xf32>
    %39 = vector.broadcast %38 : vector<48x1xf32> to vector<48x512xf32>
    %40 = arith.addf %37, %39 : vector<48x512xf32>
    %41 = math.tanh %40 : vector<48x512xf32>
    %42 = tpu.concatenate %41, %7 in 0 : vector<48x512xf32>, vector<16x512xf32> -> vector<64x512xf32>
    %c280 = arith.constant 280 : index
    %c0_23 = arith.constant 0 : index
    %43 = vector.load %arg3[%c280, %c0_23] : memref<344x128xf32, #tpu.memory_space<vmem>>, vector<32x64xf32>
    %cst_24 = arith.constant dense<0.000000e+00> : vector<32x512xf32>
    %44 = tpu.matmul %43, %42, %cst_24 {dimension_numbers = #tpu.dot_dimension_numbers<[1], [0], [0], [1], [0, 0, 1, 1], [], []>} : vector<32x64xf32>, vector<64x512xf32>, vector<32x512xf32> -> vector<32x512xf32>
    %c312 = arith.constant 312 : index
    %c0_25 = arith.constant 0 : index
    %45 = vector.load %arg3[%c312, %c0_25] : memref<344x128xf32, #tpu.memory_space<vmem>>, vector<32x1xf32>
    %46 = vector.broadcast %45 : vector<32x1xf32> to vector<32x512xf32>
    %47 = arith.addf %44, %46 : vector<32x512xf32>
    %c0_26 = arith.constant 0 : index
    %c0_27 = arith.constant 0 : index
    %48 = vector.load %arg4[%c0_26, %c0_27] : memref<32x512xf32, #tpu.memory_space<vmem>>, vector<32x512xf32>
    tpu.vector_store %arg4[%c0_26, %c0_27], %47 {strides = array<i32>} : memref<32x512xf32, #tpu.memory_space<vmem>>, vector<32x512xf32>,
    return
  }
  func.func @transform_0(%arg0: i32) -> (i32, i32) {
    %c0_i32 = arith.constant 0 : i32
    %c0_i32_0 = arith.constant 0 : i32
    return %c0_i32, %arg0 : i32, i32
  }
  func.func @transform_1(%arg0: i32) -> (i32, i32) {
    %c0_i32 = arith.constant 0 : i32
    %c0_i32_0 = arith.constant 0 : i32
    return %c0_i32, %arg0 : i32, i32
  }
  func.func @transform_2(%arg0: i32) -> (i32, i32) {
    %c0_i32 = arith.constant 0 : i32
    %c0_i32_0 = arith.constant 0 : i32
    %c0_i32_1 = arith.constant 0 : i32
    return %c0_i32, %c0_i32_0 : i32, i32
  }
  func.func @transform_3(%arg0: i32) -> (i32, i32) {
    %c0_i32 = arith.constant 0 : i32
    %c0_i32_0 = arith.constant 0 : i32
    return %c0_i32, %arg0 : i32, i32
  }
}

</mosaic_0001>

<llo_original>
// kernel: forward.1
$region0: #{forward.1}
  #allocation0 [shape = 'u32[]', space=smem, size = 0x4, offset = 0x4, fixed_abs, tag = 'smem constant byte address 0x4 - core index']
  #allocation1 [shape = 'u32[144,128]{1,0:T(1,128)}', space=vmem, size = 0x12000, scoped, tag = 'internal scratch']
  %s0 = inlined_call_operand.hbm [shape: f32[36,512], index: 0, kind: input, shape index: {}]
  %s1 = inlined_call_operand.vmem [shape: f32[8,512], index: 1, kind: input, shape index: {}]
  %s2 = inlined_call_operand.hbm [shape: f32[344,128], index: 2, kind: input, shape index: {}]
  %s3 = inlined_call_operand.hbm [shape: f32[32,512], index: 3, kind: output, shape index: {}]
  %s4 = sld [smem:[#allocation0]]
  $region30: #{forward.1} parent=0
    _
  %s6 = ssub.s32 1, %s4
  %s7 = scalar_select 0, %s6, %s4
  $region1: #{forward.1} parent=0
    #allocation2 [shape = 'u8[81920]{0}', space=vmem, size = 0x14000, scoped, tag = 'input window, operand 0, single buffered']
    #allocation3 [shape = 's32[1]{0}', space=sflag, size = 0x4, scoped, tag = 'scoped memory for forward.1']
    #allocation4 [shape = 's32[1]{0}', space=sflag, size = 0x4, scoped, tag = 'scoped memory for forward.1']
    #allocation5 [shape = 'u8[176128]{0}', space=vmem, size = 0x2b000, scoped, tag = 'input window, operand 2, single buffered']
    #allocation6 [shape = 's32[1]{0}', space=sflag, size = 0x4, scoped, tag = 'scoped memory for forward.1']
    #allocation7 [shape = 'u8[65536]{0}', space=vmem, size = 0x10000, scoped, tag = 'output window, operand 0, single buffered']
    %8 = vsyncpa [#allocation3], 0
    %9 = vsyncpa [#allocation6], 0
    %10 = vsyncpa [#allocation4], 0
    // Predicated region
    $region2: #{forward.1} parent=1 // pred_check
      _
    $region3: #{forward.1} parent=1 // pred_check_branch
      %12 = sbr.rel (0) target = $region5
    $region4: #{forward.1} parent=1 // pred_region
      %s14 = ssub.s32 2560, 2560
      %15 = vsyncadd [#allocation3], %s14
      %s16 = sshll.u32 [#allocation2], 4
      %s17 = int_to_ptr.vmem [resolvable:$true] %s16
      %22 = dma.hbm_to_vmem [thread:$0]  %s0, 2560, %s17, [#allocation3], 512, 512, 32
    $region5: #{forward.1} parent=1 // pred_fallthru
      _
    // Predicated region
    $region6: #{forward.1} parent=1 // pred_check
      _
    $region7: #{forward.1} parent=1 // pred_check_branch
      %24 = sbr.rel (0) target = $region9
    $region8: #{forward.1} parent=1 // pred_region
      _
    $region9: #{forward.1} parent=1 // pred_fallthru
      _
    // Predicated region
    $region10: #{forward.1} parent=1 // pred_check
      _
    $region11: #{forward.1} parent=1 // pred_check_branch
      %26 = sbr.rel (0) target = $region13
    $region12: #{forward.1} parent=1 // pred_region
      %s28 = ssub.s32 5504, 5504
      %29 = vsyncadd [#allocation6], %s28
      %s30 = sshll.u32 [#allocation5], 4
      %s31 = int_to_ptr.vmem [resolvable:$true] %s30
      %36 = dma.hbm_to_vmem [thread:$0]  %s2, 5504, %s31, [#allocation6], 128, 128, 8
    $region13: #{forward.1} parent=1 // pred_fallthru
      _
    // Predicated region
    $region14: #{forward.1} parent=1 // pred_check
      _
    $region15: #{forward.1} parent=1 // pred_check_branch
      %38 = sbr.rel (0) target = $region17
    $region16: #{forward.1} parent=1 // pred_region
      %39 = dma.done [#allocation3], 2560
    $region17: #{forward.1} parent=1 // pred_fallthru
      _
    // Predicated region
    $region18: #{forward.1} parent=1 // pred_check
      _
    $region19: #{forward.1} parent=1 // pred_check_branch
      %41 = sbr.rel (0) target = $region21
    $region20: #{forward.1} parent=1 // pred_region
      %42 = dma.done [#allocation6], 5504
    $region21: #{forward.1} parent=1 // pred_fallthru
      _
    %v43 = vld [vmem:[#allocation5] sm:$0xff]
    %v44 = vld [vmem:[%s1] sm:$0xff]
    %v45 = vld [vmem:[%s1 + $0x8] sm:$0xff]
    %v46 = vld [vmem:[%s1 + $0x10] sm:$0xff]
    %v47 = vld [vmem:[%s1 + $0x18] sm:$0xff]
    %vm48 = vcmask 64512
    %v50 = vsel %vm48, %v43, 0
    %52 = vmatprep.subr.mxu0 0.0
    %53 = vmatpush1.msra.mxu0 0.0
    %54 = vmatprep.subr.mxu0 0.0
    %55 = vmatpush1.msra.mxu0 0.0
    %56 = vmatprep.subr.mxu0 0.0
    %57 = vmatpush1.msra.mxu0 0.0
    %58 = vmatprep.subr.mxu0 0.0
    %59 = vmatpush1.msra.mxu0 0.0
    %60 = vmatprep.subr.mxu0 0.0
    %61 = vmatpush1.msra.mxu0 0.0
    %62 = vmatprep.subr.mxu0 0.0
    %63 = vmatpush1.msra.mxu0 0.0
    %64 = vmatprep.subr.mxu0 0.0
    %65 = vmatpush1.msra.mxu0 0.0
    %66 = vmatprep.subr.mxu0 0.0
    %67 = vmatpush1.msra.mxu0 0.0
    %68 = vmatprep.subr.mxu0 0.0
    %69 = vmatpush1.msra.mxu0 0.0
    %70 = vmatprep.subr.mxu0 0.0
    %71 = vmatpush1.msra.mxu0 0.0
    %72 = vmatprep.subr.mxu0 0.0
    %73 = vmatpush1.msra.mxu0 0.0
    %74 = vmatprep.subr.mxu0 0.0
    %75 = vmatpush1.msra.mxu0 0.0
    %76 = vmatprep.subr.mxu0 0.0
    %77 = vmatpush1.msra.mxu0 0.0
    %78 = vmatprep.subr.mxu0 0.0
    %79 = vmatpush1.msra.mxu0 0.0
    %80 = vmatprep.subr.mxu0 0.0
    %81 = vmatpush1.msra.mxu0 0.0
    %82 = vmatprep.subr.mxu0 %v45
    %83 = vmatpush1.msra.mxu0 %v44
    %84 = vmatprep.subr.mxu0 0.0
    %85 = vmatpush2.msra.mxu0 0.0
    %86 = vmatprep.subr.mxu0 0.0
    %87 = vmatpush2.msra.mxu0 0.0
    %88 = vmatprep.subr.mxu0 0.0
    %89 = vmatpush2.msra.mxu0 0.0
    %90 = vmatprep.subr.mxu0 0.0
    %91 = vmatpush2.msra.mxu0 0.0
    %92 = vmatprep.subr.mxu0 0.0
    %93 = vmatpush2.msra.mxu0 0.0
    %94 = vmatprep.subr.mxu0 0.0
    %95 = vmatpush2.msra.mxu0 0.0
    %96 = vmatprep.subr.mxu0 0.0
    %97 = vmatpush2.msra.mxu0 0.0
    %98 = vmatprep.subr.mxu0 0.0
    %99 = vmatpush2.msra.mxu0 0.0
    %100 = vmatprep.subr.mxu0 0.0
    %101 = vmatpush2.msra.mxu0 0.0
    %102 = vmatprep.subr.mxu0 0.0
    %103 = vmatpush2.msra.mxu0 0.0
    %104 = vmatprep.subr.mxu0 0.0
    %105 = vmatpush2.msra.mxu0 0.0
    %106 = vmatprep.subr.mxu0 0.0
    %107 = vmatpush2.msra.mxu0 0.0
    %108 = vmatprep.subr.mxu0 0.0
    %109 = vmatpush2.msra.mxu0 0.0
    %110 = vmatprep.subr.mxu0 0.0
    %111 = vmatpush2.msra.mxu0 0.0
    %112 = vmatprep.subr.mxu0 0.0
    %113 = vmatpush2.msra.mxu0 0.0
    %114 = vmatprep.subr.mxu0 0.0
    %115 = vmatpush2.msra.mxu0 0.0
    %116 = vmatprep.mubr.f32.mxu0 0.0
    %117 = vmatmul.mubr.f32.gmra.mxu0 %v50
    %v118 = vpop.f32.mrf.mxu0
    %v119 = vadd.f32 0.0, %v118
    %v120 = vpop.f32.mrf.mxu0
    %v121 = vadd.f32 0.0, %v120
    %122 = vdwg.mxu0
    %123 = vmatprep.subr.mxu0 0.0
    %124 = vmatpush1.msra.mxu0 0.0
    %125 = vmatprep.subr.mxu0 0.0
    %126 = vmatpush1.msra.mxu0 0.0
    %127 = vmatprep.subr.mxu0 0.0
    %128 = vmatpush1.msra.mxu0 0.0
    %129 = vmatprep.subr.mxu0 0.0
    %130 = vmatpush1.msra.mxu0 0.0
    %131 = vmatprep.subr.mxu0 0.0
    %132 = vmatpush1.msra.mxu0 0.0
    %133 = vmatprep.subr.mxu0 0.0
    %134 = vmatpush1.msra.mxu0 0.0
    %135 = vmatprep.subr.mxu0 0.0
    %136 = vmatpush1.msra.mxu0 0.0
    %137 = vmatprep.subr.mxu0 0.0
    %138 = vmatpush1.msra.mxu0 0.0
    %139 = vmatprep.subr.mxu0 0.0
    %140 = vmatpush1.msra.mxu0 0.0
    %141 = vmatprep.subr.mxu0 0.0
    %142 = vmatpush1.msra.mxu0 0.0
    %143 = vmatprep.subr.mxu0 0.0
    %144 = vmatpush1.msra.mxu0 0.0
    %145 = vmatprep.subr.mxu0 0.0
    %146 = vmatpush1.msra.mxu0 0.0
    %147 = vmatprep.subr.mxu0 0.0
    %148 = vmatpush1.msra.mxu0 0.0
    %149 = vmatprep.subr.mxu0 0.0
    %150 = vmatpush1.msra.mxu0 0.0
    %151 = vmatprep.subr.mxu0 0.0
    %152 = vmatpush1.msra.mxu0 0.0
    %153 = vmatprep.subr.mxu0 %v47
    %154 = vmatpush1.msra.mxu0 %v46
    %155 = vmatprep.subr.mxu0 0.0
    %156 = vmatpush2.msra.mxu0 0.0
    %157 = vmatprep.subr.mxu0 0.0
    %158 = vmatpush2.msra.mxu0 0.0
    %159 = vmatprep.subr.mxu0 0.0
    %160 = vmatpush2.msra.mxu0 0.0
    %161 = vmatprep.subr.mxu0 0.0
    %162 = vmatpush2.msra.mxu0 0.0
    %163 = vmatprep.subr.mxu0 0.0
    %164 = vmatpush2.msra.mxu0 0.0
    %165 = vmatprep.subr.mxu0 0.0
    %166 = vmatpush2.msra.mxu0 0.0
    %167 = vmatprep.subr.mxu0 0.0
    %168 = vmatpush2.msra.mxu0 0.0
    %169 = vmatprep.subr.mxu0 0.0
    %170 = vmatpush2.msra.mxu0 0.0
    %171 = vmatprep.subr.mxu0 0.0
    %172 = vmatpush2.msra.mxu0 0.0
    %173 = vmatprep.subr.mxu0 0.0
    %174 = vmatpush2.msra.mxu0 0.0
    %175 = vmatprep.subr.mxu0 0.0
    %176 = vmatpush2.msra.mxu0 0.0
    %177 = vmatprep.subr.mxu0 0.0
    %178 = vmatpush2.msra.mxu0 0.0
    %179 = vmatprep.subr.mxu0 0.0
    %180 = vmatpush2.msra.mxu0 0.0
    %181 = vmatprep.subr.mxu0 0.0
    %182 = vmatpush2.msra.mxu0 0.0
    %183 = vmatprep.subr.mxu0 0.0
    %184 = vmatpush2.msra.mxu0 0.0
    %185 = vmatprep.subr.mxu0 0.0
    %186 = vmatpush2.msra.mxu0 0.0
    %187 = vmatprep.mubr.f32.mxu0 0.0
    %188 = vmatmul.mubr.f32.gmra.mxu0 %v50
    %v189 = vpop.f32.mrf.mxu0
    %v190 = vadd.f32 0.0, %v189
    %v191 = vpop.f32.mrf.mxu0
    %v192 = vadd.f32 0.0, %v191
    %193 = vdwg.mxu0
    %v194 = vld [vmem:[#allocation5 + $0x8] sm:$0xff]
    %v195 = vld [vmem:[#allocation5 + $0x10] sm:$0xff]
    %v196 = vld [vmem:[#allocation5 + $0x18] sm:$0xff]
    %v197 = vld [vmem:[#allocation5 + $0x20] sm:$0xff]
    %199 = vset.pattern.permute.xlu0 0
    %200 = vperm.xlu0 %199, %v196
    %v201 = vpop.permute.xlu0 %200
    %204 = vset.pattern.permute.xlu0 0
    %205 = vperm.xlu0 %204, %v197
    %v206 = vpop.permute.xlu0 %205
    %v209 = vsel %vm48, %v194, 0
    %v212 = vsel %vm48, %v195, 0
    %214 = vmatprep.subr.mxu0 0.0
    %215 = vmatpush1.msra.mxu0 0.0
    %216 = vmatprep.subr.mxu0 0.0
    %217 = vmatpush1.msra.mxu0 0.0
    %218 = vmatprep.subr.mxu0 0.0
    %219 = vmatpush1.msra.mxu0 0.0
    %220 = vmatprep.subr.mxu0 0.0
    %221 = vmatpush1.msra.mxu0 0.0
    %222 = vmatprep.subr.mxu0 0.0
    %223 = vmatpush1.msra.mxu0 0.0
    %224 = vmatprep.subr.mxu0 0.0
    %225 = vmatpush1.msra.mxu0 0.0
    %226 = vmatprep.subr.mxu0 0.0
    %227 = vmatpush1.msra.mxu0 0.0
    %228 = vmatprep.subr.mxu0 0.0
    %229 = vmatpush1.msra.mxu0 0.0
    %230 = vmatprep.subr.mxu0 0.0
    %231 = vmatpush1.msra.mxu0 0.0
    %232 = vmatprep.subr.mxu0 0.0
    %233 = vmatpush1.msra.mxu0 0.0
    %234 = vmatprep.subr.mxu0 0.0
    %235 = vmatpush1.msra.mxu0 0.0
    %236 = vmatprep.subr.mxu0 0.0
    %237 = vmatpush1.msra.mxu0 0.0
    %238 = vmatprep.subr.mxu0 0.0
    %239 = vmatpush1.msra.mxu0 0.0
    %240 = vmatprep.subr.mxu0 0.0
    %241 = vmatpush1.msra.mxu0 0.0
    %242 = vmatprep.subr.mxu0 0.0
    %243 = vmatpush1.msra.mxu0 0.0
    %244 = vmatprep.subr.mxu0 %v121
    %245 = vmatpush1.msra.mxu0 %v119
    %246 = vmatprep.subr.mxu0 0.0
    %247 = vmatpush2.msra.mxu0 0.0
    %248 = vmatprep.subr.mxu0 0.0
    %249 = vmatpush2.msra.mxu0 0.0
    %250 = vmatprep.subr.mxu0 0.0
    %251 = vmatpush2.msra.mxu0 0.0
    %252 = vmatprep.subr.mxu0 0.0
    %253 = vmatpush2.msra.mxu0 0.0
    %254 = vmatprep.subr.mxu0 0.0
    %255 = vmatpush2.msra.mxu0 0.0
    %256 = vmatprep.subr.mxu0 0.0
    %257 = vmatpush2.msra.mxu0 0.0
    %258 = vmatprep.subr.mxu0 0.0
    %259 = vmatpush2.msra.mxu0 0.0
    %260 = vmatprep.subr.mxu0 0.0
    %261 = vmatpush2.msra.mxu0 0.0
    %262 = vmatprep.subr.mxu0 0.0
    %263 = vmatpush2.msra.mxu0 0.0
    %264 = vmatprep.subr.mxu0 0.0
    %265 = vmatpush2.msra.mxu0 0.0
    %266 = vmatprep.subr.mxu0 0.0
    %267 = vmatpush2.msra.mxu0 0.0
    %268 = vmatprep.subr.mxu0 0.0
    %269 = vmatpush2.msra.mxu0 0.0
    %270 = vmatprep.subr.mxu0 0.0
    %271 = vmatpush2.msra.mxu0 0.0
    %272 = vmatprep.subr.mxu0 0.0
    %273 = vmatpush2.msra.mxu0 0.0
    %274 = vmatprep.subr.mxu0 0.0
    %275 = vmatpush2.msra.mxu0 0.0
    %276 = vmatprep.subr.mxu0 0.0
    %277 = vmatpush2.msra.mxu0 0.0
    %278 = vmatprep.mubr.f32.mxu0 0.0
    %279 = vmatmul.mubr.f32.gmra.mxu0 %v209
    %v280 = vpop.f32.mrf.mxu0
    %v281 = vadd.f32 %v201, %v280
    %v282 = vpop.f32.mrf.mxu0
    %v283 = vadd.f32 %v201, %v282
    %284 = vmatprep.mubr.f32.mxu0 0.0
    %285 = vmatmul.mubr.f32.gmra.mxu0 %v212
    %v286 = vpop.f32.mrf.mxu0
    %v287 = vadd.f32 %v206, %v286
    %v288 = vpop.f32.mrf.mxu0
    %v289 = vadd.f32 %v206, %v288
    %290 = vdwg.mxu0
    %291 = vmatprep.subr.mxu0 0.0
    %292 = vmatpush1.msra.mxu0 0.0
    %293 = vmatprep.subr.mxu0 0.0
    %294 = vmatpush1.msra.mxu0 0.0
    %295 = vmatprep.subr.mxu0 0.0
    %296 = vmatpush1.msra.mxu0 0.0
    %297 = vmatprep.subr.mxu0 0.0
    %298 = vmatpush1.msra.mxu0 0.0
    %299 = vmatprep.subr.mxu0 0.0
    %300 = vmatpush1.msra.mxu0 0.0
    %301 = vmatprep.subr.mxu0 0.0
    %302 = vmatpush1.msra.mxu0 0.0
    %303 = vmatprep.subr.mxu0 0.0
    %304 = vmatpush1.msra.mxu0 0.0
    %305 = vmatprep.subr.mxu0 0.0
    %306 = vmatpush1.msra.mxu0 0.0
    %307 = vmatprep.subr.mxu0 0.0
    %308 = vmatpush1.msra.mxu0 0.0
    %309 = vmatprep.subr.mxu0 0.0
    %310 = vmatpush1.msra.mxu0 0.0
    %311 = vmatprep.subr.mxu0 0.0
    %312 = vmatpush1.msra.mxu0 0.0
    %313 = vmatprep.subr.mxu0 0.0
    %314 = vmatpush1.msra.mxu0 0.0
    %315 = vmatprep.subr.mxu0 0.0
    %316 = vmatpush1.msra.mxu0 0.0
    %317 = vmatprep.subr.mxu0 0.0
    %318 = vmatpush1.msra.mxu0 0.0
    %319 = vmatprep.subr.mxu0 0.0
    %320 = vmatpush1.msra.mxu0 0.0
    %321 = vmatprep.subr.mxu0 %v192
    %322 = vmatpush1.msra.mxu0 %v190
    %323 = vmatprep.subr.mxu0 0.0
    %324 = vmatpush2.msra.mxu0 0.0
    %325 = vmatprep.subr.mxu0 0.0
    %326 = vmatpush2.msra.mxu0 0.0
    %327 = vmatprep.subr.mxu0 0.0
    %328 = vmatpush2.msra.mxu0 0.0
    %329 = vmatprep.subr.mxu0 0.0
    %330 = vmatpush2.msra.mxu0 0.0
    %331 = vmatprep.subr.mxu0 0.0
    %332 = vmatpush2.msra.mxu0 0.0
    %333 = vmatprep.subr.mxu0 0.0
    %334 = vmatpush2.msra.mxu0 0.0
    %335 = vmatprep.subr.mxu0 0.0
    %336 = vmatpush2.msra.mxu0 0.0
    %337 = vmatprep.subr.mxu0 0.0
    %338 = vmatpush2.msra.mxu0 0.0
    %339 = vmatprep.subr.mxu0 0.0
    %340 = vmatpush2.msra.mxu0 0.0
    %341 = vmatprep.subr.mxu0 0.0
    %342 = vmatpush2.msra.mxu0 0.0
    %343 = vmatprep.subr.mxu0 0.0
    %344 = vmatpush2.msra.mxu0 0.0
    %345 = vmatprep.subr.mxu0 0.0
    %346 = vmatpush2.msra.mxu0 0.0
    %347 = vmatprep.subr.mxu0 0.0
    %348 = vmatpush2.msra.mxu0 0.0
    %349 = vmatprep.subr.mxu0 0.0
    %350 = vmatpush2.msra.mxu0 0.0
    %351 = vmatprep.subr.mxu0 0.0
    %352 = vmatpush2.msra.mxu0 0.0
    %353 = vmatprep.subr.mxu0 0.0
    %354 = vmatpush2.msra.mxu0 0.0
    %355 = vmatprep.mubr.f32.mxu0 0.0
    %356 = vmatmul.mubr.f32.gmra.mxu0 %v209
    %v357 = vpop.f32.mrf.mxu0
    %v358 = vadd.f32 %v201, %v357
    %v359 = vpop.f32.mrf.mxu0
    %v360 = vadd.f32 %v201, %v359
    %361 = vmatprep.mubr.f32.mxu0 0.0
    %362 = vmatmul.mubr.f32.gmra.mxu0 %v212
    %v363 = vpop.f32.mrf.mxu0
    %v364 = vadd.f32 %v206, %v363
    %v365 = vpop.f32.mrf.mxu0
    %v366 = vadd.f32 %v206, %v365
    %367 = vdwg.mxu0
    %v368 = vld [vmem:[#allocation2] sm:$0xff]
    %v369 = vld [vmem:[#allocation2 + $0x8] sm:$0xff]
    %v370 = vld [vmem:[#allocation2 + $0x10] sm:$0xff]
    %v371 = vld [vmem:[#allocation2 + $0x18] sm:$0xff]
    %v372 = vld [vmem:[#allocation2 + $0x20] sm:$0xff]
    %v373 = vld [vmem:[#allocation2 + $0x28] sm:$0xff]
    %v374 = vld [vmem:[#allocation2 + $0x30] sm:$0xff]
    %v375 = vld [vmem:[#allocation2 + $0x38] sm:$0xff]
    %v376 = vld [vmem:[#allocation2 + $0x40] sm:$0xff]
    %v377 = vld [vmem:[#allocation2 + $0x48] sm:$0xff]
    %v378 = vld [vmem:[#allocation2 + $0x50] sm:$0xff]
    %v379 = vld [vmem:[#allocation2 + $0x58] sm:$0xff]
    %v380 = vld [vmem:[#allocation2 + $0x60] sm:$0xff]
    %v381 = vld [vmem:[#allocation2 + $0x68] sm:$0xff]
    %v382 = vld [vmem:[#allocation2 + $0x70] sm:$0xff]
    %v383 = vld [vmem:[#allocation2 + $0x78] sm:$0xff]
    %v384 = vld [vmem:[#allocation2 + $0x80] sm:$0xf]
    %v385 = vld [vmem:[#allocation2 + $0x88] sm:$0xf]
    %v386 = vld [vmem:[#allocation2 + $0x90] sm:$0xf]
    %v387 = vld [vmem:[#allocation2 + $0x98] sm:$0xf]
    %v388 = vld [vmem:[#allocation5 + $0x28] sm:$0xff]
    %v389 = vld [vmem:[#allocation5 + $0x30] sm:$0xff]
    %v390 = vld [vmem:[#allocation5 + $0x38] sm:$0xff]
    %v391 = vld [vmem:[#allocation5 + $0x40] sm:$0xff]
    %v392 = vld [vmem:[#allocation5 + $0x48] sm:$0xff]
    %v393 = vld [vmem:[#allocation5 + $0x50] sm:$0xff]
    %v394 = vld [vmem:[#allocation5 + $0x58] sm:$0xff]
    %v395 = vld [vmem:[#allocation5 + $0x60] sm:$0xff]
    %397 = vset.pattern.permute.xlu0 0
    %398 = vperm.xlu0 %397, %v392
    %v399 = vpop.permute.xlu0 %398
    %402 = vset.pattern.permute.xlu0 0
    %403 = vperm.xlu0 %402, %v393
    %v404 = vpop.permute.xlu0 %403
    %407 = vset.pattern.permute.xlu0 0
    %408 = vperm.xlu0 %407, %v394
    %v409 = vpop.permute.xlu0 %408
    %412 = vset.pattern.permute.xlu0 0
    %413 = vperm.xlu0 %412, %v395
    %v414 = vpop.permute.xlu0 %413
    %vm416 = vcmask 293888
    %v418 = vsel %vm416, %v388, 0
    %v421 = vsel %vm416, %v389, 0
    %v424 = vsel %vm416, %v390, 0
    %v427 = vsel %vm416, %v391, 0
    %vm429 = vcmask 1043456
    %v431 = vsel %vm429, %v384, 0
    %v434 = vsel %vm429, %v385, 0
    %v437 = vsel %vm429, %v386, 0
    %v440 = vsel %vm429, %v387, 0
    %442 = vmatprep.subr.mxu0 0.0
    %443 = vmatpush1.msra.mxu0 0.0
    %444 = vmatprep.subr.mxu0 0.0
    %445 = vmatpush1.msra.mxu0 0.0
    %446 = vmatprep.subr.mxu0 0.0
    %447 = vmatpush1.msra.mxu0 0.0
    %448 = vmatprep.subr.mxu0 0.0
    %449 = vmatpush1.msra.mxu0 0.0
    %450 = vmatprep.subr.mxu0 0.0
    %451 = vmatpush1.msra.mxu0 0.0
    %452 = vmatprep.subr.mxu0 0.0
    %453 = vmatpush1.msra.mxu0 0.0
    %454 = vmatprep.subr.mxu0 0.0
    %455 = vmatpush1.msra.mxu0 0.0
    %456 = vmatprep.subr.mxu0 0.0
    %457 = vmatpush1.msra.mxu0 0.0
    %458 = vmatprep.subr.mxu0 0.0
    %459 = vmatpush1.msra.mxu0 0.0
    %460 = vmatprep.subr.mxu0 0.0
    %461 = vmatpush1.msra.mxu0 0.0
    %462 = vmatprep.subr.mxu0 0.0
    %463 = vmatpush1.msra.mxu0 0.0
    %464 = vmatprep.subr.mxu0 %v434
    %465 = vmatpush1.msra.mxu0 %v431
    %466 = vmatprep.subr.mxu0 %v381
    %467 = vmatpush1.msra.mxu0 %v380
    %468 = vmatprep.subr.mxu0 %v377
    %469 = vmatpush1.msra.mxu0 %v376
    %470 = vmatprep.subr.mxu0 %v373
    %471 = vmatpush1.msra.mxu0 %v372
    %472 = vmatprep.subr.mxu0 %v369
    %473 = vmatpush1.msra.mxu0 %v368
    %474 = vmatprep.subr.mxu0 0.0
    %475 = vmatpush2.msra.mxu0 0.0
    %476 = vmatprep.subr.mxu0 0.0
    %477 = vmatpush2.msra.mxu0 0.0
    %478 = vmatprep.subr.mxu0 0.0
    %479 = vmatpush2.msra.mxu0 0.0
    %480 = vmatprep.subr.mxu0 0.0
    %481 = vmatpush2.msra.mxu0 0.0
    %482 = vmatprep.subr.mxu0 0.0
    %483 = vmatpush2.msra.mxu0 0.0
    %484 = vmatprep.subr.mxu0 0.0
    %485 = vmatpush2.msra.mxu0 0.0
    %486 = vmatprep.subr.mxu0 0.0
    %487 = vmatpush2.msra.mxu0 0.0
    %488 = vmatprep.subr.mxu0 0.0
    %489 = vmatpush2.msra.mxu0 0.0
    %490 = vmatprep.subr.mxu0 0.0
    %491 = vmatpush2.msra.mxu0 0.0
    %492 = vmatprep.subr.mxu0 0.0
    %493 = vmatpush2.msra.mxu0 0.0
    %494 = vmatprep.subr.mxu0 0.0
    %495 = vmatpush2.msra.mxu0 0.0
    %496 = vmatprep.subr.mxu0 0.0
    %497 = vmatpush2.msra.mxu0 0.0
    %498 = vmatprep.subr.mxu0 0.0
    %499 = vmatpush2.msra.mxu0 0.0
    %500 = vmatprep.subr.mxu0 0.0
    %501 = vmatpush2.msra.mxu0 0.0
    %502 = vmatprep.subr.mxu0 0.0
    %503 = vmatpush2.msra.mxu0 0.0
    %504 = vmatprep.subr.mxu0 0.0
    %505 = vmatpush2.msra.mxu0 0.0
    %506 = vmatprep.mubr.f32.mxu0 0.0
    %507 = vmatmul.mubr.f32.gmra.mxu0 %v418
    %v508 = vpop.f32.mrf.mxu0
    %v509 = vadd.f32 %v399, %v508
    %v510 = vpop.f32.mrf.mxu0
    %v511 = vadd.f32 %v399, %v510
    %512 = vmatprep.mubr.f32.mxu0 0.0
    %513 = vmatmul.mubr.f32.gmra.mxu0 %v421
    %v514 = vpop.f32.mrf.mxu0
    %v515 = vadd.f32 %v404, %v514
    %v516 = vpop.f32.mrf.mxu0
    %v517 = vadd.f32 %v404, %v516
    %518 = vmatprep.mubr.f32.mxu0 0.0
    %519 = vmatmul.mubr.f32.gmra.mxu0 %v424
    %v520 = vpop.f32.mrf.mxu0
    %v521 = vadd.f32 %v409, %v520
    %v522 = vpop.f32.mrf.mxu0
    %v523 = vadd.f32 %v409, %v522
    %524 = vmatprep.mubr.f32.mxu0 0.0
    %525 = vmatmul.mubr.f32.gmra.mxu0 %v427
    %v526 = vpop.f32.mrf.mxu0
    %v527 = vadd.f32 %v414, %v526
    %v528 = vpop.f32.mrf.mxu0
    %v529 = vadd.f32 %v414, %v528
    %530 = vdwg.mxu0
    %531 = vmatprep.subr.mxu0 0.0
    %532 = vmatpush1.msra.mxu0 0.0
    %533 = vmatprep.subr.mxu0 0.0
    %534 = vmatpush1.msra.mxu0 0.0
    %535 = vmatprep.subr.mxu0 0.0
    %536 = vmatpush1.msra.mxu0 0.0
    %537 = vmatprep.subr.mxu0 0.0
    %538 = vmatpush1.msra.mxu0 0.0
    %539 = vmatprep.subr.mxu0 0.0
    %540 = vmatpush1.msra.mxu0 0.0
    %541 = vmatprep.subr.mxu0 0.0
    %542 = vmatpush1.msra.mxu0 0.0
    %543 = vmatprep.subr.mxu0 0.0
    %544 = vmatpush1.msra.mxu0 0.0
    %545 = vmatprep.subr.mxu0 0.0
    %546 = vmatpush1.msra.mxu0 0.0
    %547 = vmatprep.subr.mxu0 0.0
    %548 = vmatpush1.msra.mxu0 0.0
    %549 = vmatprep.subr.mxu0 0.0
    %550 = vmatpush1.msra.mxu0 0.0
    %551 = vmatprep.subr.mxu0 0.0
    %552 = vmatpush1.msra.mxu0 0.0
    %553 = vmatprep.subr.mxu0 %v440
    %554 = vmatpush1.msra.mxu0 %v437
    %555 = vmatprep.subr.mxu0 %v383
    %556 = vmatpush1.msra.mxu0 %v382
    %557 = vmatprep.subr.mxu0 %v379
    %558 = vmatpush1.msra.mxu0 %v378
    %559 = vmatprep.subr.mxu0 %v375
    %560 = vmatpush1.msra.mxu0 %v374
    %561 = vmatprep.subr.mxu0 %v371
    %562 = vmatpush1.msra.mxu0 %v370
    %563 = vmatprep.subr.mxu0 0.0
    %564 = vmatpush2.msra.mxu0 0.0
    %565 = vmatprep.subr.mxu0 0.0
    %566 = vmatpush2.msra.mxu0 0.0
    %567 = vmatprep.subr.mxu0 0.0
    %568 = vmatpush2.msra.mxu0 0.0
    %569 = vmatprep.subr.mxu0 0.0
    %570 = vmatpush2.msra.mxu0 0.0
    %571 = vmatprep.subr.mxu0 0.0
    %572 = vmatpush2.msra.mxu0 0.0
    %573 = vmatprep.subr.mxu0 0.0
    %574 = vmatpush2.msra.mxu0 0.0
    %575 = vmatprep.subr.mxu0 0.0
    %576 = vmatpush2.msra.mxu0 0.0
    %577 = vmatprep.subr.mxu0 0.0
    %578 = vmatpush2.msra.mxu0 0.0
    %579 = vmatprep.subr.mxu0 0.0
    %580 = vmatpush2.msra.mxu0 0.0
    %581 = vmatprep.subr.mxu0 0.0
    %582 = vmatpush2.msra.mxu0 0.0
    %583 = vmatprep.subr.mxu0 0.0
    %584 = vmatpush2.msra.mxu0 0.0
    %585 = vmatprep.subr.mxu0 0.0
    %586 = vmatpush2.msra.mxu0 0.0
    %587 = vmatprep.subr.mxu0 0.0
    %588 = vmatpush2.msra.mxu0 0.0
    %589 = vmatprep.subr.mxu0 0.0
    %590 = vmatpush2.msra.mxu0 0.0
    %591 = vmatprep.subr.mxu0 0.0
    %592 = vmatpush2.msra.mxu0 0.0
    %593 = vmatprep.subr.mxu0 0.0
    %594 = vmatpush2.msra.mxu0 0.0
    %595 = vmatprep.mubr.f32.mxu0 0.0
    %596 = vmatmul.mubr.f32.gmra.mxu0 %v418
    %v597 = vpop.f32.mrf.mxu0
    %v598 = vadd.f32 %v399, %v597
    %v599 = vpop.f32.mrf.mxu0
    %v600 = vadd.f32 %v399, %v599
    %601 = vmatprep.mubr.f32.mxu0 0.0
    %602 = vmatmul.mubr.f32.gmra.mxu0 %v421
    %v603 = vpop.f32.mrf.mxu0
    %v604 = vadd.f32 %v404, %v603
    %v605 = vpop.f32.mrf.mxu0
    %v606 = vadd.f32 %v404, %v605
    %607 = vmatprep.mubr.f32.mxu0 0.0
    %608 = vmatmul.mubr.f32.gmra.mxu0 %v424
    %v609 = vpop.f32.mrf.mxu0
    %v610 = vadd.f32 %v409, %v609
    %v611 = vpop.f32.mrf.mxu0
    %v612 = vadd.f32 %v409, %v611
    %613 = vmatprep.mubr.f32.mxu0 0.0
    %614 = vmatmul.mubr.f32.gmra.mxu0 %v427
    %v615 = vpop.f32.mrf.mxu0
    %v616 = vadd.f32 %v414, %v615
    %v617 = vpop.f32.mrf.mxu0
    %v618 = vadd.f32 %v414, %v617
    %619 = vdwg.mxu0
    %v620 = vtanh.pop %v509
    %v621 = vtanh.pop %v511
    %v622 = vtanh.pop %v598
    %v623 = vtanh.pop %v600
    %v624 = vtanh.pop %v515
    %v625 = vtanh.pop %v517
    %v626 = vtanh.pop %v604
    %v627 = vtanh.pop %v606
    %v628 = vtanh.pop %v521
    %v629 = vtanh.pop %v523
    %v630 = vtanh.pop %v610
    %v631 = vtanh.pop %v612
    %v632 = vtanh.pop %v527
    %v633 = vtanh.pop %v529
    %v634 = vtanh.pop %v616
    %v635 = vtanh.pop %v618
    %v636 = vld [vmem:[#allocation5 + $0x68] sm:$0xff]
    %v637 = vld [vmem:[#allocation5 + $0x70] sm:$0xff]
    %v638 = vld [vmem:[#allocation5 + $0x78] sm:$0xff]
    %v639 = vld [vmem:[#allocation5 + $0x80] sm:$0xff]
    %641 = vset.pattern.permute.xlu0 0
    %642 = vperm.xlu0 %641, %v638
    %v643 = vpop.permute.xlu0 %642
    %646 = vset.pattern.permute.xlu0 0
    %647 = vperm.xlu0 %646, %v639
    %v648 = vpop.permute.xlu0 %647
    %v651 = vsel %vm416, %v636, 0
    %v654 = vsel %vm416, %v637, 0
    %656 = vmatprep.subr.mxu0 0.0
    %657 = vmatpush1.msra.mxu0 0.0
    %658 = vmatprep.subr.mxu0 0.0
    %659 = vmatpush1.msra.mxu0 0.0
    %660 = vmatprep.subr.mxu0 0.0
    %661 = vmatpush1.msra.mxu0 0.0
    %662 = vmatprep.subr.mxu0 0.0
    %663 = vmatpush1.msra.mxu0 0.0
    %664 = vmatprep.subr.mxu0 0.0
    %665 = vmatpush1.msra.mxu0 0.0
    %666 = vmatprep.subr.mxu0 0.0
    %667 = vmatpush1.msra.mxu0 0.0
    %668 = vmatprep.subr.mxu0 0.0
    %669 = vmatpush1.msra.mxu0 0.0
    %670 = vmatprep.subr.mxu0 0.0
    %671 = vmatpush1.msra.mxu0 0.0
    %672 = vmatprep.subr.mxu0 0.0
    %673 = vmatpush1.msra.mxu0 0.0
    %674 = vmatprep.subr.mxu0 0.0
    %675 = vmatpush1.msra.mxu0 0.0
    %676 = vmatprep.subr.mxu0 0.0
    %677 = vmatpush1.msra.mxu0 0.0
    %678 = vmatprep.subr.mxu0 %v434
    %679 = vmatpush1.msra.mxu0 %v431
    %680 = vmatprep.subr.mxu0 %v381
    %681 = vmatpush1.msra.mxu0 %v380
    %682 = vmatprep.subr.mxu0 %v377
    %683 = vmatpush1.msra.mxu0 %v376
    %684 = vmatprep.subr.mxu0 %v373
    %685 = vmatpush1.msra.mxu0 %v372
    %686 = vmatprep.subr.mxu0 %v369
    %687 = vmatpush1.msra.mxu0 %v368
    %688 = vmatprep.subr.mxu0 0.0
    %689 = vmatpush2.msra.mxu0 0.0
    %690 = vmatprep.subr.mxu0 0.0
    %691 = vmatpush2.msra.mxu0 0.0
    %692 = vmatprep.subr.mxu0 0.0
    %693 = vmatpush2.msra.mxu0 0.0
    %694 = vmatprep.subr.mxu0 0.0
    %695 = vmatpush2.msra.mxu0 0.0
    %696 = vmatprep.subr.mxu0 0.0
    %697 = vmatpush2.msra.mxu0 0.0
    %698 = vmatprep.subr.mxu0 0.0
    %699 = vmatpush2.msra.mxu0 0.0
    %700 = vmatprep.subr.mxu0 0.0
    %701 = vmatpush2.msra.mxu0 0.0
    %702 = vmatprep.subr.mxu0 0.0
    %703 = vmatpush2.msra.mxu0 0.0
    %704 = vmatprep.subr.mxu0 0.0
    %705 = vmatpush2.msra.mxu0 0.0
    %706 = vmatprep.subr.mxu0 0.0
    %707 = vmatpush2.msra.mxu0 0.0
    %708 = vmatprep.subr.mxu0 0.0
    %709 = vmatpush2.msra.mxu0 0.0
    %710 = vmatprep.subr.mxu0 0.0
    %711 = vmatpush2.msra.mxu0 0.0
    %712 = vmatprep.subr.mxu0 0.0
    %713 = vmatpush2.msra.mxu0 0.0
    %714 = vmatprep.subr.mxu0 0.0
    %715 = vmatpush2.msra.mxu0 0.0
    %716 = vmatprep.subr.mxu0 0.0
    %717 = vmatpush2.msra.mxu0 0.0
    %718 = vmatprep.subr.mxu0 0.0
    %719 = vmatpush2.msra.mxu0 0.0
    %720 = vmatprep.mubr.f32.mxu0 0.0
    %721 = vmatmul.mubr.f32.gmra.mxu0 %v651
    %v722 = vpop.f32.mrf.mxu0
    %v723 = vadd.f32 %v643, %v722
    %v724 = vpop.f32.mrf.mxu0
    %v725 = vadd.f32 %v643, %v724
    %726 = vmatprep.mubr.f32.mxu0 0.0
    %727 = vmatmul.mubr.f32.gmra.mxu0 %v654
    %v728 = vpop.f32.mrf.mxu0
    %v729 = vadd.f32 %v648, %v728
    %v730 = vpop.f32.mrf.mxu0
    %v731 = vadd.f32 %v648, %v730
    %732 = vdwg.mxu0
    %733 = vmatprep.subr.mxu0 0.0
    %734 = vmatpush1.msra.mxu0 0.0
    %735 = vmatprep.subr.mxu0 0.0
    %736 = vmatpush1.msra.mxu0 0.0
    %737 = vmatprep.subr.mxu0 0.0
    %738 = vmatpush1.msra.mxu0 0.0
    %739 = vmatprep.subr.mxu0 0.0
    %740 = vmatpush1.msra.mxu0 0.0
    %741 = vmatprep.subr.mxu0 0.0
    %742 = vmatpush1.msra.mxu0 0.0
    %743 = vmatprep.subr.mxu0 0.0
    %744 = vmatpush1.msra.mxu0 0.0
    %745 = vmatprep.subr.mxu0 0.0
    %746 = vmatpush1.msra.mxu0 0.0
    %747 = vmatprep.subr.mxu0 0.0
    %748 = vmatpush1.msra.mxu0 0.0
    %749 = vmatprep.subr.mxu0 0.0
    %750 = vmatpush1.msra.mxu0 0.0
    %751 = vmatprep.subr.mxu0 0.0
    %752 = vmatpush1.msra.mxu0 0.0
    %753 = vmatprep.subr.mxu0 0.0
    %754 = vmatpush1.msra.mxu0 0.0
    %755 = vmatprep.subr.mxu0 %v440
    %756 = vmatpush1.msra.mxu0 %v437
    %757 = vmatprep.subr.mxu0 %v383
    %758 = vmatpush1.msra.mxu0 %v382
    %759 = vmatprep.subr.mxu0 %v379
    %760 = vmatpush1.msra.mxu0 %v378
    %761 = vmatprep.subr.mxu0 %v375
    %762 = vmatpush1.msra.mxu0 %v374
    %763 = vmatprep.subr.mxu0 %v371
    %764 = vmatpush1.msra.mxu0 %v370
    %765 = vmatprep.subr.mxu0 0.0
    %766 = vmatpush2.msra.mxu0 0.0
    %767 = vmatprep.subr.mxu0 0.0
    %768 = vmatpush2.msra.mxu0 0.0
    %769 = vmatprep.subr.mxu0 0.0
    %770 = vmatpush2.msra.mxu0 0.0
    %771 = vmatprep.subr.mxu0 0.0
    %772 = vmatpush2.msra.mxu0 0.0
    %773 = vmatprep.subr.mxu0 0.0
    %774 = vmatpush2.msra.mxu0 0.0
    %775 = vmatprep.subr.mxu0 0.0
    %776 = vmatpush2.msra.mxu0 0.0
    %777 = vmatprep.subr.mxu0 0.0
    %778 = vmatpush2.msra.mxu0 0.0
    %779 = vmatprep.subr.mxu0 0.0
    %780 = vmatpush2.msra.mxu0 0.0
    %781 = vmatprep.subr.mxu0 0.0
    %782 = vmatpush2.msra.mxu0 0.0
    %783 = vmatprep.subr.mxu0 0.0
    %784 = vmatpush2.msra.mxu0 0.0
    %785 = vmatprep.subr.mxu0 0.0
    %786 = vmatpush2.msra.mxu0 0.0
    %787 = vmatprep.subr.mxu0 0.0
    %788 = vmatpush2.msra.mxu0 0.0
    %789 = vmatprep.subr.mxu0 0.0
    %790 = vmatpush2.msra.mxu0 0.0
    %791 = vmatprep.subr.mxu0 0.0
    %792 = vmatpush2.msra.mxu0 0.0
    %793 = vmatprep.subr.mxu0 0.0
    %794 = vmatpush2.msra.mxu0 0.0
    %795 = vmatprep.subr.mxu0 0.0
    %796 = vmatpush2.msra.mxu0 0.0
    %797 = vmatprep.mubr.f32.mxu0 0.0
    %798 = vmatmul.mubr.f32.gmra.mxu0 %v651
    %v799 = vpop.f32.mrf.mxu0
    %v800 = vadd.f32 %v643, %v799
    %v801 = vpop.f32.mrf.mxu0
    %v802 = vadd.f32 %v643, %v801
    %803 = vmatprep.mubr.f32.mxu0 0.0
    %804 = vmatmul.mubr.f32.gmra.mxu0 %v654
    %v805 = vpop.f32.mrf.mxu0
    %v806 = vadd.f32 %v648, %v805
    %v807 = vpop.f32.mrf.mxu0
    %v808 = vadd.f32 %v648, %v807
    %809 = vdwg.mxu0
    %v810 = vtanh.pop %v723
    %v811 = vtanh.pop %v725
    %v812 = vtanh.pop %v800
    %v813 = vtanh.pop %v802
    %v814 = vtanh.pop %v729
    %v815 = vtanh.pop %v731
    %v816 = vtanh.pop %v806
    %v817 = vtanh.pop %v808
    %v818 = vld [vmem:[#allocation5 + $0x88] sm:$0xff]
    %v819 = vld [vmem:[#allocation5 + $0x90] sm:$0xff]
    %v820 = vld [vmem:[#allocation5 + $0x98] sm:$0xff]
    %v821 = vld [vmem:[#allocation5 + $0xa0] sm:$0xff]
    %823 = vset.pattern.permute.xlu0 0
    %824 = vperm.xlu0 %823, %v820
    %v825 = vpop.permute.xlu0 %824
    %828 = vset.pattern.permute.xlu0 0
    %829 = vperm.xlu0 %828, %v821
    %v830 = vpop.permute.xlu0 %829
    %vm832 = vcmask 261120
    %v834 = vsel %vm832, %v818, 0
    %v837 = vsel %vm832, %v819, 0
    %839 = vmatprep.subr.mxu0 0.0
    %840 = vmatpush1.msra.mxu0 0.0
    %841 = vmatprep.subr.mxu0 0.0
    %842 = vmatpush1.msra.mxu0 0.0
    %843 = vmatprep.subr.mxu0 0.0
    %844 = vmatpush1.msra.mxu0 0.0
    %845 = vmatprep.subr.mxu0 0.0
    %846 = vmatpush1.msra.mxu0 0.0
    %847 = vmatprep.subr.mxu0 0.0
    %848 = vmatpush1.msra.mxu0 0.0
    %849 = vmatprep.subr.mxu0 0.0
    %850 = vmatpush1.msra.mxu0 0.0
    %851 = vmatprep.subr.mxu0 0.0
    %852 = vmatpush1.msra.mxu0 0.0
    %853 = vmatprep.subr.mxu0 0.0
    %854 = vmatpush1.msra.mxu0 0.0
    %855 = vmatprep.subr.mxu0 0.0
    %856 = vmatpush1.msra.mxu0 0.0
    %857 = vmatprep.subr.mxu0 0.0
    %858 = vmatpush1.msra.mxu0 0.0
    %859 = vmatprep.subr.mxu0 0.0
    %860 = vmatpush1.msra.mxu0 0.0
    %861 = vmatprep.subr.mxu0 0.0
    %862 = vmatpush1.msra.mxu0 0.0
    %863 = vmatprep.subr.mxu0 %v633
    %864 = vmatpush1.msra.mxu0 %v632
    %865 = vmatprep.subr.mxu0 %v629
    %866 = vmatpush1.msra.mxu0 %v628
    %867 = vmatprep.subr.mxu0 %v625
    %868 = vmatpush1.msra.mxu0 %v624
    %869 = vmatprep.subr.mxu0 %v621
    %870 = vmatpush1.msra.mxu0 %v620
    %871 = vmatprep.subr.mxu0 0.0
    %872 = vmatpush2.msra.mxu0 0.0
    %873 = vmatprep.subr.mxu0 0.0
    %874 = vmatpush2.msra.mxu0 0.0
    %875 = vmatprep.subr.mxu0 0.0
    %876 = vmatpush2.msra.mxu0 0.0
    %877 = vmatprep.subr.mxu0 0.0
    %878 = vmatpush2.msra.mxu0 0.0
    %879 = vmatprep.subr.mxu0 0.0
    %880 = vmatpush2.msra.mxu0 0.0
    %881 = vmatprep.subr.mxu0 0.0
    %882 = vmatpush2.msra.mxu0 0.0
    %883 = vmatprep.subr.mxu0 0.0
    %884 = vmatpush2.msra.mxu0 0.0
    %885 = vmatprep.subr.mxu0 0.0
    %886 = vmatpush2.msra.mxu0 0.0
    %887 = vmatprep.subr.mxu0 0.0
    %888 = vmatpush2.msra.mxu0 0.0
    %889 = vmatprep.subr.mxu0 0.0
    %890 = vmatpush2.msra.mxu0 0.0
    %891 = vmatprep.subr.mxu0 0.0
    %892 = vmatpush2.msra.mxu0 0.0
    %893 = vmatprep.subr.mxu0 0.0
    %894 = vmatpush2.msra.mxu0 0.0
    %895 = vmatprep.subr.mxu0 0.0
    %896 = vmatpush2.msra.mxu0 0.0
    %897 = vmatprep.subr.mxu0 0.0
    %898 = vmatpush2.msra.mxu0 0.0
    %899 = vmatprep.subr.mxu0 0.0
    %900 = vmatpush2.msra.mxu0 0.0
    %901 = vmatprep.subr.mxu0 0.0
    %902 = vmatpush2.msra.mxu0 0.0
    %903 = vmatprep.mubr.f32.mxu0 0.0
    %904 = vmatmul.mubr.f32.gmra.mxu0 %v834
    %v905 = vpop.f32.mrf.mxu0
    %v906 = vadd.f32 %v825, %v905
    %v907 = vpop.f32.mrf.mxu0
    %v908 = vadd.f32 %v825, %v907
    %909 = vmatprep.mubr.f32.mxu0 0.0
    %910 = vmatmul.mubr.f32.gmra.mxu0 %v837
    %v911 = vpop.f32.mrf.mxu0
    %v912 = vadd.f32 %v830, %v911
    %v913 = vpop.f32.mrf.mxu0
    %v914 = vadd.f32 %v830, %v913
    %915 = vdwg.mxu0
    %916 = vmatprep.subr.mxu0 0.0
    %917 = vmatpush1.msra.mxu0 0.0
    %918 = vmatprep.subr.mxu0 0.0
    %919 = vmatpush1.msra.mxu0 0.0
    %920 = vmatprep.subr.mxu0 0.0
    %921 = vmatpush1.msra.mxu0 0.0
    %922 = vmatprep.subr.mxu0 0.0
    %923 = vmatpush1.msra.mxu0 0.0
    %924 = vmatprep.subr.mxu0 0.0
    %925 = vmatpush1.msra.mxu0 0.0
    %926 = vmatprep.subr.mxu0 0.0
    %927 = vmatpush1.msra.mxu0 0.0
    %928 = vmatprep.subr.mxu0 0.0
    %929 = vmatpush1.msra.mxu0 0.0
    %930 = vmatprep.subr.mxu0 0.0
    %931 = vmatpush1.msra.mxu0 0.0
    %932 = vmatprep.subr.mxu0 0.0
    %933 = vmatpush1.msra.mxu0 0.0
    %934 = vmatprep.subr.mxu0 0.0
    %935 = vmatpush1.msra.mxu0 0.0
    %936 = vmatprep.subr.mxu0 0.0
    %937 = vmatpush1.msra.mxu0 0.0
    %938 = vmatprep.subr.mxu0 0.0
    %939 = vmatpush1.msra.mxu0 0.0
    %940 = vmatprep.subr.mxu0 %v635
    %941 = vmatpush1.msra.mxu0 %v634
    %942 = vmatprep.subr.mxu0 %v631
    %943 = vmatpush1.msra.mxu0 %v630
    %944 = vmatprep.subr.mxu0 %v627
    %945 = vmatpush1.msra.mxu0 %v626
    %946 = vmatprep.subr.mxu0 %v623
    %947 = vmatpush1.msra.mxu0 %v622
    %948 = vmatprep.subr.mxu0 0.0
    %949 = vmatpush2.msra.mxu0 0.0
    %950 = vmatprep.subr.mxu0 0.0
    %951 = vmatpush2.msra.mxu0 0.0
    %952 = vmatprep.subr.mxu0 0.0
    %953 = vmatpush2.msra.mxu0 0.0
    %954 = vmatprep.subr.mxu0 0.0
    %955 = vmatpush2.msra.mxu0 0.0
    %956 = vmatprep.subr.mxu0 0.0
    %957 = vmatpush2.msra.mxu0 0.0
    %958 = vmatprep.subr.mxu0 0.0
    %959 = vmatpush2.msra.mxu0 0.0
    %960 = vmatprep.subr.mxu0 0.0
    %961 = vmatpush2.msra.mxu0 0.0
    %962 = vmatprep.subr.mxu0 0.0
    %963 = vmatpush2.msra.mxu0 0.0
    %964 = vmatprep.subr.mxu0 0.0
    %965 = vmatpush2.msra.mxu0 0.0
    %966 = vmatprep.subr.mxu0 0.0
    %967 = vmatpush2.msra.mxu0 0.0
    %968 = vmatprep.subr.mxu0 0.0
    %969 = vmatpush2.msra.mxu0 0.0
    %970 = vmatprep.subr.mxu0 0.0
    %971 = vmatpush2.msra.mxu0 0.0
    %972 = vmatprep.subr.mxu0 0.0
    %973 = vmatpush2.msra.mxu0 0.0
    %974 = vmatprep.subr.mxu0 0.0
    %975 = vmatpush2.msra.mxu0 0.0
    %976 = vmatprep.subr.mxu0 0.0
    %977 = vmatpush2.msra.mxu0 0.0
    %978 = vmatprep.subr.mxu0 0.0
    %979 = vmatpush2.msra.mxu0 0.0
    %980 = vmatprep.mubr.f32.mxu0 0.0
    %981 = vmatmul.mubr.f32.gmra.mxu0 %v834
    %v982 = vpop.f32.mrf.mxu0
    %v983 = vadd.f32 %v825, %v982
    %v984 = vpop.f32.mrf.mxu0
    %v985 = vadd.f32 %v825, %v984
    %986 = vmatprep.mubr.f32.mxu0 0.0
    %987 = vmatmul.mubr.f32.gmra.mxu0 %v837
    %v988 = vpop.f32.mrf.mxu0
    %v989 = vadd.f32 %v830, %v988
    %v990 = vpop.f32.mrf.mxu0
    %v991 = vadd.f32 %v830, %v990
    %992 = vdwg.mxu0
    %v993 = vtanh.pop %v906
    %v994 = vtanh.pop %v908
    %v995 = vtanh.pop %v983
    %v996 = vtanh.pop %v985
    %v997 = vtanh.pop %v912
    %v998 = vtanh.pop %v914
    %v999 = vtanh.pop %v989
    %v1000 = vtanh.pop %v991
    %v1001 = vld [vmem:[#allocation5 + $0xa8] sm:$0xff]
    %v1002 = vld [vmem:[#allocation5 + $0xb0] sm:$0xff]
    %1004 = vset.pattern.permute.xlu0 0
    %1005 = vperm.xlu0 %1004, %v1002
    %v1006 = vpop.permute.xlu0 %1005
    %v1009 = vsel %vm832, %v1001, 0
    %1011 = vmatprep.subr.mxu0 0.0
    %1012 = vmatpush1.msra.mxu0 0.0
    %1013 = vmatprep.subr.mxu0 0.0
    %1014 = vmatpush1.msra.mxu0 0.0
    %1015 = vmatprep.subr.mxu0 0.0
    %1016 = vmatpush1.msra.mxu0 0.0
    %1017 = vmatprep.subr.mxu0 0.0
    %1018 = vmatpush1.msra.mxu0 0.0
    %1019 = vmatprep.subr.mxu0 0.0
    %1020 = vmatpush1.msra.mxu0 0.0
    %1021 = vmatprep.subr.mxu0 0.0
    %1022 = vmatpush1.msra.mxu0 0.0
    %1023 = vmatprep.subr.mxu0 0.0
    %1024 = vmatpush1.msra.mxu0 0.0
    %1025 = vmatprep.subr.mxu0 0.0
    %1026 = vmatpush1.msra.mxu0 0.0
    %1027 = vmatprep.subr.mxu0 0.0
    %1028 = vmatpush1.msra.mxu0 0.0
    %1029 = vmatprep.subr.mxu0 0.0
    %1030 = vmatpush1.msra.mxu0 0.0
    %1031 = vmatprep.subr.mxu0 0.0
    %1032 = vmatpush1.msra.mxu0 0.0
    %1033 = vmatprep.subr.mxu0 0.0
    %1034 = vmatpush1.msra.mxu0 0.0
    %1035 = vmatprep.subr.mxu0 %v289
    %1036 = vmatpush1.msra.mxu0 %v287
    %1037 = vmatprep.subr.mxu0 %v283
    %1038 = vmatpush1.msra.mxu0 %v281
    %1039 = vmatprep.subr.mxu0 %v815
    %1040 = vmatpush1.msra.mxu0 %v814
    %1041 = vmatprep.subr.mxu0 %v811
    %1042 = vmatpush1.msra.mxu0 %v810
    %1043 = vmatprep.subr.mxu0 0.0
    %1044 = vmatpush2.msra.mxu0 0.0
    %1045 = vmatprep.subr.mxu0 0.0
    %1046 = vmatpush2.msra.mxu0 0.0
    %1047 = vmatprep.subr.mxu0 0.0
    %1048 = vmatpush2.msra.mxu0 0.0
    %1049 = vmatprep.subr.mxu0 0.0
    %1050 = vmatpush2.msra.mxu0 0.0
    %1051 = vmatprep.subr.mxu0 0.0
    %1052 = vmatpush2.msra.mxu0 0.0
    %1053 = vmatprep.subr.mxu0 0.0
    %1054 = vmatpush2.msra.mxu0 0.0
    %1055 = vmatprep.subr.mxu0 0.0
    %1056 = vmatpush2.msra.mxu0 0.0
    %1057 = vmatprep.subr.mxu0 0.0
    %1058 = vmatpush2.msra.mxu0 0.0
    %1059 = vmatprep.subr.mxu0 0.0
    %1060 = vmatpush2.msra.mxu0 0.0
    %1061 = vmatprep.subr.mxu0 0.0
    %1062 = vmatpush2.msra.mxu0 0.0
    %1063 = vmatprep.subr.mxu0 0.0
    %1064 = vmatpush2.msra.mxu0 0.0
    %1065 = vmatprep.subr.mxu0 0.0
    %1066 = vmatpush2.msra.mxu0 0.0
    %1067 = vmatprep.subr.mxu0 0.0
    %1068 = vmatpush2.msra.mxu0 0.0
    %1069 = vmatprep.subr.mxu0 0.0
    %1070 = vmatpush2.msra.mxu0 0.0
    %1071 = vmatprep.subr.mxu0 0.0
    %1072 = vmatpush2.msra.mxu0 0.0
    %1073 = vmatprep.subr.mxu0 0.0
    %1074 = vmatpush2.msra.mxu0 0.0
    %1075 = vmatprep.mubr.f32.mxu0 0.0
    %1076 = vmatmul.mubr.f32.gmra.mxu0 %v1009
    %v1077 = vpop.f32.mrf.mxu0
    %v1078 = vadd.f32 %v1006, %v1077
    %v1079 = vpop.f32.mrf.mxu0
    %v1080 = vadd.f32 %v1006, %v1079
    %1081 = vdwg.mxu0
    %1082 = vmatprep.subr.mxu0 0.0
    %1083 = vmatpush1.msra.mxu0 0.0
    %1084 = vmatprep.subr.mxu0 0.0
    %1085 = vmatpush1.msra.mxu0 0.0
    %1086 = vmatprep.subr.mxu0 0.0
    %1087 = vmatpush1.msra.mxu0 0.0
    %1088 = vmatprep.subr.mxu0 0.0
    %1089 = vmatpush1.msra.mxu0 0.0
    %1090 = vmatprep.subr.mxu0 0.0
    %1091 = vmatpush1.msra.mxu0 0.0
    %1092 = vmatprep.subr.mxu0 0.0
    %1093 = vmatpush1.msra.mxu0 0.0
    %1094 = vmatprep.subr.mxu0 0.0
    %1095 = vmatpush1.msra.mxu0 0.0
    %1096 = vmatprep.subr.mxu0 0.0
    %1097 = vmatpush1.msra.mxu0 0.0
    %1098 = vmatprep.subr.mxu0 0.0
    %1099 = vmatpush1.msra.mxu0 0.0
    %1100 = vmatprep.subr.mxu0 0.0
    %1101 = vmatpush1.msra.mxu0 0.0
    %1102 = vmatprep.subr.mxu0 0.0
    %1103 = vmatpush1.msra.mxu0 0.0
    %1104 = vmatprep.subr.mxu0 0.0
    %1105 = vmatpush1.msra.mxu0 0.0
    %1106 = vmatprep.subr.mxu0 %v366
    %1107 = vmatpush1.msra.mxu0 %v364
    %1108 = vmatprep.subr.mxu0 %v360
    %1109 = vmatpush1.msra.mxu0 %v358
    %1110 = vmatprep.subr.mxu0 %v817
    %1111 = vmatpush1.msra.mxu0 %v816
    %1112 = vmatprep.subr.mxu0 %v813
    %1113 = vmatpush1.msra.mxu0 %v812
    %1114 = vmatprep.subr.mxu0 0.0
    %1115 = vmatpush2.msra.mxu0 0.0
    %1116 = vmatprep.subr.mxu0 0.0
    %1117 = vmatpush2.msra.mxu0 0.0
    %1118 = vmatprep.subr.mxu0 0.0
    %1119 = vmatpush2.msra.mxu0 0.0
    %1120 = vmatprep.subr.mxu0 0.0
    %1121 = vmatpush2.msra.mxu0 0.0
    %1122 = vmatprep.subr.mxu0 0.0
    %1123 = vmatpush2.msra.mxu0 0.0
    %1124 = vmatprep.subr.mxu0 0.0
    %1125 = vmatpush2.msra.mxu0 0.0
    %1126 = vmatprep.subr.mxu0 0.0
    %1127 = vmatpush2.msra.mxu0 0.0
    %1128 = vmatprep.subr.mxu0 0.0
    %1129 = vmatpush2.msra.mxu0 0.0
    %1130 = vmatprep.subr.mxu0 0.0
    %1131 = vmatpush2.msra.mxu0 0.0
    %1132 = vmatprep.subr.mxu0 0.0
    %1133 = vmatpush2.msra.mxu0 0.0
    %1134 = vmatprep.subr.mxu0 0.0
    %1135 = vmatpush2.msra.mxu0 0.0
    %1136 = vmatprep.subr.mxu0 0.0
    %1137 = vmatpush2.msra.mxu0 0.0
    %1138 = vmatprep.subr.mxu0 0.0
    %1139 = vmatpush2.msra.mxu0 0.0
    %1140 = vmatprep.subr.mxu0 0.0
    %1141 = vmatpush2.msra.mxu0 0.0
    %1142 = vmatprep.subr.mxu0 0.0
    %1143 = vmatpush2.msra.mxu0 0.0
    %1144 = vmatprep.subr.mxu0 0.0
    %1145 = vmatpush2.msra.mxu0 0.0
    %1146 = vmatprep.mubr.f32.mxu0 0.0
    %1147 = vmatmul.mubr.f32.gmra.mxu0 %v1009
    %v1148 = vpop.f32.mrf.mxu0
    %v1149 = vadd.f32 %v1006, %v1148
    %v1150 = vpop.f32.mrf.mxu0
    %v1151 = vadd.f32 %v1006, %v1150
    %1152 = vdwg.mxu0
    %v1153 = vtanh.pop %v1078
    %v1154 = vtanh.pop %v1080
    %v1155 = vtanh.pop %v1149
    %v1156 = vtanh.pop %v1151
    %v1157 = vld [vmem:[#allocation5 + $0xb8] sm:$0xff]
    %v1158 = vld [vmem:[#allocation5 + $0xc0] sm:$0xff]
    %v1159 = vld [vmem:[#allocation5 + $0xc8] sm:$0xff]
    %v1160 = vld [vmem:[#allocation5 + $0xd0] sm:$0xff]
    %v1161 = vld [vmem:[#allocation5 + $0xd8] sm:$0xff]
    %v1162 = vld [vmem:[#allocation5 + $0xe0] sm:$0xff]
    %v1163 = vld [vmem:[#allocation5 + $0xe8] sm:$0xff]
    %v1164 = vld [vmem:[#allocation5 + $0xf0] sm:$0xff]
    %v1165 = vld [vmem:[#allocation5 + $0xf8] sm:$0xff]
    %v1166 = vld [vmem:[#allocation5 + $0x100] sm:$0xff]
    %v1167 = vld [vmem:[#allocation5 + $0x108] sm:$0xff]
    %v1168 = vld [vmem:[#allocation5 + $0x110] sm:$0xff]
    %1170 = vset.pattern.permute.xlu0 0
    %1171 = vperm.xlu0 %1170, %v1163
    %v1172 = vpop.permute.xlu0 %1171
    %1175 = vset.pattern.permute.xlu0 0
    %1176 = vperm.xlu0 %1175, %v1164
    %v1177 = vpop.permute.xlu0 %1176
    %1180 = vset.pattern.permute.xlu0 0
    %1181 = vperm.xlu0 %1180, %v1165
    %v1182 = vpop.permute.xlu0 %1181
    %1185 = vset.pattern.permute.xlu0 0
    %1186 = vperm.xlu0 %1185, %v1166
    %v1187 = vpop.permute.xlu0 %1186
    %1190 = vset.pattern.permute.xlu0 0
    %1191 = vperm.xlu0 %1190, %v1167
    %v1192 = vpop.permute.xlu0 %1191
    %1195 = vset.pattern.permute.xlu0 0
    %1196 = vperm.xlu0 %1195, %v1168
    %v1197 = vpop.permute.xlu0 %1196
    %v1200 = vsel %vm832, %v1157, 0
    %v1203 = vsel %vm832, %v1158, 0
    %v1206 = vsel %vm832, %v1159, 0
    %v1209 = vsel %vm832, %v1160, 0
    %v1212 = vsel %vm832, %v1161, 0
    %v1215 = vsel %vm832, %v1162, 0
    %1217 = vmatprep.subr.mxu0 0.0
    %1218 = vmatpush1.msra.mxu0 0.0
    %1219 = vmatprep.subr.mxu0 0.0
    %1220 = vmatpush1.msra.mxu0 0.0
    %1221 = vmatprep.subr.mxu0 0.0
    %1222 = vmatpush1.msra.mxu0 0.0
    %1223 = vmatprep.subr.mxu0 0.0
    %1224 = vmatpush1.msra.mxu0 0.0
    %1225 = vmatprep.subr.mxu0 0.0
    %1226 = vmatpush1.msra.mxu0 0.0
    %1227 = vmatprep.subr.mxu0 0.0
    %1228 = vmatpush1.msra.mxu0 0.0
    %1229 = vmatprep.subr.mxu0 0.0
    %1230 = vmatpush1.msra.mxu0 0.0
    %1231 = vmatprep.subr.mxu0 0.0
    %1232 = vmatpush1.msra.mxu0 0.0
    %1233 = vmatprep.subr.mxu0 0.0
    %1234 = vmatpush1.msra.mxu0 0.0
    %1235 = vmatprep.subr.mxu0 0.0
    %1236 = vmatpush1.msra.mxu0 0.0
    %1237 = vmatprep.subr.mxu0 0.0
    %1238 = vmatpush1.msra.mxu0 0.0
    %1239 = vmatprep.subr.mxu0 0.0
    %1240 = vmatpush1.msra.mxu0 0.0
    %1241 = vmatprep.subr.mxu0 %v121
    %1242 = vmatpush1.msra.mxu0 %v119
    %1243 = vmatprep.subr.mxu0 %v1154
    %1244 = vmatpush1.msra.mxu0 %v1153
    %1245 = vmatprep.subr.mxu0 %v998
    %1246 = vmatpush1.msra.mxu0 %v997
    %1247 = vmatprep.subr.mxu0 %v994
    %1248 = vmatpush1.msra.mxu0 %v993
    %1249 = vmatprep.subr.mxu0 0.0
    %1250 = vmatpush2.msra.mxu0 0.0
    %1251 = vmatprep.subr.mxu0 0.0
    %1252 = vmatpush2.msra.mxu0 0.0
    %1253 = vmatprep.subr.mxu0 0.0
    %1254 = vmatpush2.msra.mxu0 0.0
    %1255 = vmatprep.subr.mxu0 0.0
    %1256 = vmatpush2.msra.mxu0 0.0
    %1257 = vmatprep.subr.mxu0 0.0
    %1258 = vmatpush2.msra.mxu0 0.0
    %1259 = vmatprep.subr.mxu0 0.0
    %1260 = vmatpush2.msra.mxu0 0.0
    %1261 = vmatprep.subr.mxu0 0.0
    %1262 = vmatpush2.msra.mxu0 0.0
    %1263 = vmatprep.subr.mxu0 0.0
    %1264 = vmatpush2.msra.mxu0 0.0
    %1265 = vmatprep.subr.mxu0 0.0
    %1266 = vmatpush2.msra.mxu0 0.0
    %1267 = vmatprep.subr.mxu0 0.0
    %1268 = vmatpush2.msra.mxu0 0.0
    %1269 = vmatprep.subr.mxu0 0.0
    %1270 = vmatpush2.msra.mxu0 0.0
    %1271 = vmatprep.subr.mxu0 0.0
    %1272 = vmatpush2.msra.mxu0 0.0
    %1273 = vmatprep.subr.mxu0 0.0
    %1274 = vmatpush2.msra.mxu0 0.0
    %1275 = vmatprep.subr.mxu0 0.0
    %1276 = vmatpush2.msra.mxu0 0.0
    %1277 = vmatprep.subr.mxu0 0.0
    %1278 = vmatpush2.msra.mxu0 0.0
    %1279 = vmatprep.subr.mxu0 0.0
    %1280 = vmatpush2.msra.mxu0 0.0
    %1281 = vmatprep.mubr.f32.mxu0 0.0
    %1282 = vmatmul.mubr.f32.gmra.mxu0 %v1200
    %v1283 = vpop.f32.mrf.mxu0
    %v1284 = vadd.f32 %v1172, %v1283
    %v1285 = vpop.f32.mrf.mxu0
    %v1286 = vadd.f32 %v1172, %v1285
    %1287 = vmatprep.mubr.f32.mxu0 0.0
    %1288 = vmatmul.mubr.f32.gmra.mxu0 %v1203
    %v1289 = vpop.f32.mrf.mxu0
    %v1290 = vadd.f32 %v1177, %v1289
    %v1291 = vpop.f32.mrf.mxu0
    %v1292 = vadd.f32 %v1177, %v1291
    %1293 = vmatprep.mubr.f32.mxu0 0.0
    %1294 = vmatmul.mubr.f32.gmra.mxu0 %v1206
    %v1295 = vpop.f32.mrf.mxu0
    %v1296 = vadd.f32 %v1182, %v1295
    %v1297 = vpop.f32.mrf.mxu0
    %v1298 = vadd.f32 %v1182, %v1297
    %1299 = vmatprep.mubr.f32.mxu0 0.0
    %1300 = vmatmul.mubr.f32.gmra.mxu0 %v1209
    %v1301 = vpop.f32.mrf.mxu0
    %v1302 = vadd.f32 %v1187, %v1301
    %v1303 = vpop.f32.mrf.mxu0
    %v1304 = vadd.f32 %v1187, %v1303
    %1305 = vmatprep.mubr.f32.mxu0 0.0
    %1306 = vmatmul.mubr.f32.gmra.mxu0 %v1212
    %v1307 = vpop.f32.mrf.mxu0
    %v1308 = vadd.f32 %v1192, %v1307
    %v1309 = vpop.f32.mrf.mxu0
    %v1310 = vadd.f32 %v1192, %v1309
    %1311 = vmatprep.mubr.f32.mxu0 0.0
    %1312 = vmatmul.mubr.f32.gmra.mxu0 %v1215
    %v1313 = vpop.f32.mrf.mxu0
    %v1314 = vadd.f32 %v1197, %v1313
    %v1315 = vpop.f32.mrf.mxu0
    %v1316 = vadd.f32 %v1197, %v1315
    %1317 = vdwg.mxu0
    %1318 = vmatprep.subr.mxu0 0.0
    %1319 = vmatpush1.msra.mxu0 0.0
    %1320 = vmatprep.subr.mxu0 0.0
    %1321 = vmatpush1.msra.mxu0 0.0
    %1322 = vmatprep.subr.mxu0 0.0
    %1323 = vmatpush1.msra.mxu0 0.0
    %1324 = vmatprep.subr.mxu0 0.0
    %1325 = vmatpush1.msra.mxu0 0.0
    %1326 = vmatprep.subr.mxu0 0.0
    %1327 = vmatpush1.msra.mxu0 0.0
    %1328 = vmatprep.subr.mxu0 0.0
    %1329 = vmatpush1.msra.mxu0 0.0
    %1330 = vmatprep.subr.mxu0 0.0
    %1331 = vmatpush1.msra.mxu0 0.0
    %1332 = vmatprep.subr.mxu0 0.0
    %1333 = vmatpush1.msra.mxu0 0.0
    %1334 = vmatprep.subr.mxu0 0.0
    %1335 = vmatpush1.msra.mxu0 0.0
    %1336 = vmatprep.subr.mxu0 0.0
    %1337 = vmatpush1.msra.mxu0 0.0
    %1338 = vmatprep.subr.mxu0 0.0
    %1339 = vmatpush1.msra.mxu0 0.0
    %1340 = vmatprep.subr.mxu0 0.0
    %1341 = vmatpush1.msra.mxu0 0.0
    %1342 = vmatprep.subr.mxu0 %v192
    %1343 = vmatpush1.msra.mxu0 %v190
    %1344 = vmatprep.subr.mxu0 %v1156
    %1345 = vmatpush1.msra.mxu0 %v1155
    %1346 = vmatprep.subr.mxu0 %v1000
    %1347 = vmatpush1.msra.mxu0 %v999
    %1348 = vmatprep.subr.mxu0 %v996
    %1349 = vmatpush1.msra.mxu0 %v995
    %1350 = vmatprep.subr.mxu0 0.0
    %1351 = vmatpush2.msra.mxu0 0.0
    %1352 = vmatprep.subr.mxu0 0.0
    %1353 = vmatpush2.msra.mxu0 0.0
    %1354 = vmatprep.subr.mxu0 0.0
    %1355 = vmatpush2.msra.mxu0 0.0
    %1356 = vmatprep.subr.mxu0 0.0
    %1357 = vmatpush2.msra.mxu0 0.0
    %1358 = vmatprep.subr.mxu0 0.0
    %1359 = vmatpush2.msra.mxu0 0.0
    %1360 = vmatprep.subr.mxu0 0.0
    %1361 = vmatpush2.msra.mxu0 0.0
    %1362 = vmatprep.subr.mxu0 0.0
    %1363 = vmatpush2.msra.mxu0 0.0
    %1364 = vmatprep.subr.mxu0 0.0
    %1365 = vmatpush2.msra.mxu0 0.0
    %1366 = vmatprep.subr.mxu0 0.0
    %1367 = vmatpush2.msra.mxu0 0.0
    %1368 = vmatprep.subr.mxu0 0.0
    %1369 = vmatpush2.msra.mxu0 0.0
    %1370 = vmatprep.subr.mxu0 0.0
    %1371 = vmatpush2.msra.mxu0 0.0
    %1372 = vmatprep.subr.mxu0 0.0
    %1373 = vmatpush2.msra.mxu0 0.0
    %1374 = vmatprep.subr.mxu0 0.0
    %1375 = vmatpush2.msra.mxu0 0.0
    %1376 = vmatprep.subr.mxu0 0.0
    %1377 = vmatpush2.msra.mxu0 0.0
    %1378 = vmatprep.subr.mxu0 0.0
    %1379 = vmatpush2.msra.mxu0 0.0
    %1380 = vmatprep.subr.mxu0 0.0
    %1381 = vmatpush2.msra.mxu0 0.0
    %1382 = vmatprep.mubr.f32.mxu0 0.0
    %1383 = vmatmul.mubr.f32.gmra.mxu0 %v1200
    %v1384 = vpop.f32.mrf.mxu0
    %v1385 = vadd.f32 %v1172, %v1384
    %v1386 = vpop.f32.mrf.mxu0
    %v1387 = vadd.f32 %v1172, %v1386
    %1388 = vmatprep.mubr.f32.mxu0 0.0
    %1389 = vmatmul.mubr.f32.gmra.mxu0 %v1203
    %v1390 = vpop.f32.mrf.mxu0
    %v1391 = vadd.f32 %v1177, %v1390
    %v1392 = vpop.f32.mrf.mxu0
    %v1393 = vadd.f32 %v1177, %v1392
    %1394 = vmatprep.mubr.f32.mxu0 0.0
    %1395 = vmatmul.mubr.f32.gmra.mxu0 %v1206
    %v1396 = vpop.f32.mrf.mxu0
    %v1397 = vadd.f32 %v1182, %v1396
    %v1398 = vpop.f32.mrf.mxu0
    %v1399 = vadd.f32 %v1182, %v1398
    %1400 = vmatprep.mubr.f32.mxu0 0.0
    %1401 = vmatmul.mubr.f32.gmra.mxu0 %v1209
    %v1402 = vpop.f32.mrf.mxu0
    %v1403 = vadd.f32 %v1187, %v1402
    %v1404 = vpop.f32.mrf.mxu0
    %v1405 = vadd.f32 %v1187, %v1404
    %1406 = vmatprep.mubr.f32.mxu0 0.0
    %1407 = vmatmul.mubr.f32.gmra.mxu0 %v1212
    %v1408 = vpop.f32.mrf.mxu0
    %v1409 = vadd.f32 %v1192, %v1408
    %v1410 = vpop.f32.mrf.mxu0
    %v1411 = vadd.f32 %v1192, %v1410
    %1412 = vmatprep.mubr.f32.mxu0 0.0
    %1413 = vmatmul.mubr.f32.gmra.mxu0 %v1215
    %v1414 = vpop.f32.mrf.mxu0
    %v1415 = vadd.f32 %v1197, %v1414
    %v1416 = vpop.f32.mrf.mxu0
    %v1417 = vadd.f32 %v1197, %v1416
    %1418 = vdwg.mxu0
    %v1419 = vtanh.pop %v1284
    %v1420 = vtanh.pop %v1286
    %v1421 = vtanh.pop %v1385
    %v1422 = vtanh.pop %v1387
    %v1423 = vtanh.pop %v1290
    %v1424 = vtanh.pop %v1292
    %v1425 = vtanh.pop %v1391
    %v1426 = vtanh.pop %v1393
    %v1427 = vtanh.pop %v1296
    %v1428 = vtanh.pop %v1298
    %v1429 = vtanh.pop %v1397
    %v1430 = vtanh.pop %v1399
    %v1431 = vtanh.pop %v1302
    %v1432 = vtanh.pop %v1304
    %v1433 = vtanh.pop %v1403
    %v1434 = vtanh.pop %v1405
    %v1435 = vtanh.pop %v1308
    %v1436 = vtanh.pop %v1310
    %v1437 = vtanh.pop %v1409
    %v1438 = vtanh.pop %v1411
    %v1439 = vtanh.pop %v1314
    %v1440 = vtanh.pop %v1316
    %v1441 = vtanh.pop %v1415
    %v1442 = vtanh.pop %v1417
    %v1443 = vld [vmem:[#allocation5 + $0x118] sm:$0xff]
    %v1444 = vld [vmem:[#allocation5 + $0x120] sm:$0xff]
    %v1445 = vld [vmem:[#allocation5 + $0x128] sm:$0xff]
    %v1446 = vld [vmem:[#allocation5 + $0x130] sm:$0xff]
    %v1447 = vld [vmem:[#allocation5 + $0x138] sm:$0xff]
    %v1448 = vld [vmem:[#allocation5 + $0x140] sm:$0xff]
    %v1449 = vld [vmem:[#allocation5 + $0x148] sm:$0xff]
    %v1450 = vld [vmem:[#allocation5 + $0x150] sm:$0xff]
    %1452 = vset.pattern.permute.xlu0 0
    %1453 = vperm.xlu0 %1452, %v1447
    %v1454 = vpop.permute.xlu0 %1453
    %1457 = vset.pattern.permute.xlu0 0
    %1458 = vperm.xlu0 %1457, %v1448
    %v1459 = vpop.permute.xlu0 %1458
    %1462 = vset.pattern.permute.xlu0 0
    %1463 = vperm.xlu0 %1462, %v1449
    %v1464 = vpop.permute.xlu0 %1463
    %1467 = vset.pattern.permute.xlu0 0
    %1468 = vperm.xlu0 %1467, %v1450
    %v1469 = vpop.permute.xlu0 %1468
    %vm1471 = vcmask 523264
    %v1473 = vsel %vm1471, %v1443, 0
    %v1476 = vsel %vm1471, %v1444, 0
    %v1479 = vsel %vm1471, %v1445, 0
    %v1482 = vsel %vm1471, %v1446, 0
    %1484 = vmatprep.subr.mxu0 0.0
    %1485 = vmatpush1.msra.mxu0 0.0
    %1486 = vmatprep.subr.mxu0 0.0
    %1487 = vmatpush1.msra.mxu0 0.0
    %1488 = vmatprep.subr.mxu0 0.0
    %1489 = vmatpush1.msra.mxu0 0.0
    %1490 = vmatprep.subr.mxu0 0.0
    %1491 = vmatpush1.msra.mxu0 0.0
    %1492 = vmatprep.subr.mxu0 0.0
    %1493 = vmatpush1.msra.mxu0 0.0
    %1494 = vmatprep.subr.mxu0 0.0
    %1495 = vmatpush1.msra.mxu0 0.0
    %1496 = vmatprep.subr.mxu0 0.0
    %1497 = vmatpush1.msra.mxu0 0.0
    %1498 = vmatprep.subr.mxu0 0.0
    %1499 = vmatpush1.msra.mxu0 0.0
    %1500 = vmatprep.subr.mxu0 %v289
    %1501 = vmatpush1.msra.mxu0 %v287
    %1502 = vmatprep.subr.mxu0 %v283
    %1503 = vmatpush1.msra.mxu0 %v281
    %1504 = vmatprep.subr.mxu0 %v1440
    %1505 = vmatpush1.msra.mxu0 %v1439
    %1506 = vmatprep.subr.mxu0 %v1436
    %1507 = vmatpush1.msra.mxu0 %v1435
    %1508 = vmatprep.subr.mxu0 %v1432
    %1509 = vmatpush1.msra.mxu0 %v1431
    %1510 = vmatprep.subr.mxu0 %v1428
    %1511 = vmatpush1.msra.mxu0 %v1427
    %1512 = vmatprep.subr.mxu0 %v1424
    %1513 = vmatpush1.msra.mxu0 %v1423
    %1514 = vmatprep.subr.mxu0 %v1420
    %1515 = vmatpush1.msra.mxu0 %v1419
    %1516 = vmatprep.subr.mxu0 0.0
    %1517 = vmatpush2.msra.mxu0 0.0
    %1518 = vmatprep.subr.mxu0 0.0
    %1519 = vmatpush2.msra.mxu0 0.0
    %1520 = vmatprep.subr.mxu0 0.0
    %1521 = vmatpush2.msra.mxu0 0.0
    %1522 = vmatprep.subr.mxu0 0.0
    %1523 = vmatpush2.msra.mxu0 0.0
    %1524 = vmatprep.subr.mxu0 0.0
    %1525 = vmatpush2.msra.mxu0 0.0
    %1526 = vmatprep.subr.mxu0 0.0
    %1527 = vmatpush2.msra.mxu0 0.0
    %1528 = vmatprep.subr.mxu0 0.0
    %1529 = vmatpush2.msra.mxu0 0.0
    %1530 = vmatprep.subr.mxu0 0.0
    %1531 = vmatpush2.msra.mxu0 0.0
    %1532 = vmatprep.subr.mxu0 0.0
    %1533 = vmatpush2.msra.mxu0 0.0
    %1534 = vmatprep.subr.mxu0 0.0
    %1535 = vmatpush2.msra.mxu0 0.0
    %1536 = vmatprep.subr.mxu0 0.0
    %1537 = vmatpush2.msra.mxu0 0.0
    %1538 = vmatprep.subr.mxu0 0.0
    %1539 = vmatpush2.msra.mxu0 0.0
    %1540 = vmatprep.subr.mxu0 0.0
    %1541 = vmatpush2.msra.mxu0 0.0
    %1542 = vmatprep.subr.mxu0 0.0
    %1543 = vmatpush2.msra.mxu0 0.0
    %1544 = vmatprep.subr.mxu0 0.0
    %1545 = vmatpush2.msra.mxu0 0.0
    %1546 = vmatprep.subr.mxu0 0.0
    %1547 = vmatpush2.msra.mxu0 0.0
    %1548 = vmatprep.mubr.f32.mxu0 0.0
    %1549 = vmatmul.mubr.f32.gmra.mxu0 %v1473
    %v1550 = vpop.f32.mrf.mxu0
    %v1551 = vadd.f32 %v1454, %v1550
    %v1552 = vpop.f32.mrf.mxu0
    %v1553 = vadd.f32 %v1454, %v1552
    %1554 = vmatprep.mubr.f32.mxu0 0.0
    %1555 = vmatmul.mubr.f32.gmra.mxu0 %v1476
    %v1556 = vpop.f32.mrf.mxu0
    %v1557 = vadd.f32 %v1459, %v1556
    %v1558 = vpop.f32.mrf.mxu0
    %v1559 = vadd.f32 %v1459, %v1558
    %1560 = vmatprep.mubr.f32.mxu0 0.0
    %1561 = vmatmul.mubr.f32.gmra.mxu0 %v1479
    %v1562 = vpop.f32.mrf.mxu0
    %v1563 = vadd.f32 %v1464, %v1562
    %v1564 = vpop.f32.mrf.mxu0
    %v1565 = vadd.f32 %v1464, %v1564
    %1566 = vmatprep.mubr.f32.mxu0 0.0
    %1567 = vmatmul.mubr.f32.gmra.mxu0 %v1482
    %v1568 = vpop.f32.mrf.mxu0
    %v1569 = vadd.f32 %v1469, %v1568
    %v1570 = vpop.f32.mrf.mxu0
    %v1571 = vadd.f32 %v1469, %v1570
    %1572 = vdwg.mxu0
    %1573 = vmatprep.subr.mxu0 0.0
    %1574 = vmatpush1.msra.mxu0 0.0
    %1575 = vmatprep.subr.mxu0 0.0
    %1576 = vmatpush1.msra.mxu0 0.0
    %1577 = vmatprep.subr.mxu0 0.0
    %1578 = vmatpush1.msra.mxu0 0.0
    %1579 = vmatprep.subr.mxu0 0.0
    %1580 = vmatpush1.msra.mxu0 0.0
    %1581 = vmatprep.subr.mxu0 0.0
    %1582 = vmatpush1.msra.mxu0 0.0
    %1583 = vmatprep.subr.mxu0 0.0
    %1584 = vmatpush1.msra.mxu0 0.0
    %1585 = vmatprep.subr.mxu0 0.0
    %1586 = vmatpush1.msra.mxu0 0.0
    %1587 = vmatprep.subr.mxu0 0.0
    %1588 = vmatpush1.msra.mxu0 0.0
    %1589 = vmatprep.subr.mxu0 %v366
    %1590 = vmatpush1.msra.mxu0 %v364
    %1591 = vmatprep.subr.mxu0 %v360
    %1592 = vmatpush1.msra.mxu0 %v358
    %1593 = vmatprep.subr.mxu0 %v1442
    %1594 = vmatpush1.msra.mxu0 %v1441
    %1595 = vmatprep.subr.mxu0 %v1438
    %1596 = vmatpush1.msra.mxu0 %v1437
    %1597 = vmatprep.subr.mxu0 %v1434
    %1598 = vmatpush1.msra.mxu0 %v1433
    %1599 = vmatprep.subr.mxu0 %v1430
    %1600 = vmatpush1.msra.mxu0 %v1429
    %1601 = vmatprep.subr.mxu0 %v1426
    %1602 = vmatpush1.msra.mxu0 %v1425
    %1603 = vmatprep.subr.mxu0 %v1422
    %1604 = vmatpush1.msra.mxu0 %v1421
    %1605 = vmatprep.subr.mxu0 0.0
    %1606 = vmatpush2.msra.mxu0 0.0
    %1607 = vmatprep.subr.mxu0 0.0
    %1608 = vmatpush2.msra.mxu0 0.0
    %1609 = vmatprep.subr.mxu0 0.0
    %1610 = vmatpush2.msra.mxu0 0.0
    %1611 = vmatprep.subr.mxu0 0.0
    %1612 = vmatpush2.msra.mxu0 0.0
    %1613 = vmatprep.subr.mxu0 0.0
    %1614 = vmatpush2.msra.mxu0 0.0
    %1615 = vmatprep.subr.mxu0 0.0
    %1616 = vmatpush2.msra.mxu0 0.0
    %1617 = vmatprep.subr.mxu0 0.0
    %1618 = vmatpush2.msra.mxu0 0.0
    %1619 = vmatprep.subr.mxu0 0.0
    %1620 = vmatpush2.msra.mxu0 0.0
    %1621 = vmatprep.subr.mxu0 0.0
    %1622 = vmatpush2.msra.mxu0 0.0
    %1623 = vmatprep.subr.mxu0 0.0
    %1624 = vmatpush2.msra.mxu0 0.0
    %1625 = vmatprep.subr.mxu0 0.0
    %1626 = vmatpush2.msra.mxu0 0.0
    %1627 = vmatprep.subr.mxu0 0.0
    %1628 = vmatpush2.msra.mxu0 0.0
    %1629 = vmatprep.subr.mxu0 0.0
    %1630 = vmatpush2.msra.mxu0 0.0
    %1631 = vmatprep.subr.mxu0 0.0
    %1632 = vmatpush2.msra.mxu0 0.0
    %1633 = vmatprep.subr.mxu0 0.0
    %1634 = vmatpush2.msra.mxu0 0.0
    %1635 = vmatprep.subr.mxu0 0.0
    %1636 = vmatpush2.msra.mxu0 0.0
    %1637 = vmatprep.mubr.f32.mxu0 0.0
    %1638 = vmatmul.mubr.f32.gmra.mxu0 %v1473
    %v1639 = vpop.f32.mrf.mxu0
    %v1640 = vadd.f32 %v1454, %v1639
    %v1641 = vpop.f32.mrf.mxu0
    %v1642 = vadd.f32 %v1454, %v1641
    %1643 = vmatprep.mubr.f32.mxu0 0.0
    %1644 = vmatmul.mubr.f32.gmra.mxu0 %v1476
    %v1645 = vpop.f32.mrf.mxu0
    %v1646 = vadd.f32 %v1459, %v1645
    %v1647 = vpop.f32.mrf.mxu0
    %v1648 = vadd.f32 %v1459, %v1647
    %1649 = vmatprep.mubr.f32.mxu0 0.0
    %1650 = vmatmul.mubr.f32.gmra.mxu0 %v1479
    %v1651 = vpop.f32.mrf.mxu0
    %v1652 = vadd.f32 %v1464, %v1651
    %v1653 = vpop.f32.mrf.mxu0
    %v1654 = vadd.f32 %v1464, %v1653
    %1655 = vmatprep.mubr.f32.mxu0 0.0
    %1656 = vmatmul.mubr.f32.gmra.mxu0 %v1482
    %v1657 = vpop.f32.mrf.mxu0
    %v1658 = vadd.f32 %v1469, %v1657
    %v1659 = vpop.f32.mrf.mxu0
    %v1660 = vadd.f32 %v1469, %v1659
    %1661 = vdwg.mxu0
    %1662 = vst [vmem:[#allocation7] sm:$0xff] %v1551
    %1663 = vst [vmem:[#allocation7 + $0x8] sm:$0xff] %v1553
    %1664 = vst [vmem:[#allocation7 + $0x10] sm:$0xff] %v1640
    %1665 = vst [vmem:[#allocation7 + $0x18] sm:$0xff] %v1642
    %1666 = vst [vmem:[#allocation7 + $0x20] sm:$0xff] %v1557
    %1667 = vst [vmem:[#allocation7 + $0x28] sm:$0xff] %v1559
    %1668 = vst [vmem:[#allocation7 + $0x30] sm:$0xff] %v1646
    %1669 = vst [vmem:[#allocation7 + $0x38] sm:$0xff] %v1648
    %1670 = vst [vmem:[#allocation7 + $0x40] sm:$0xff] %v1563
    %1671 = vst [vmem:[#allocation7 + $0x48] sm:$0xff] %v1565
    %1672 = vst [vmem:[#allocation7 + $0x50] sm:$0xff] %v1652
    %1673 = vst [vmem:[#allocation7 + $0x58] sm:$0xff] %v1654
    %1674 = vst [vmem:[#allocation7 + $0x60] sm:$0xff] %v1569
    %1675 = vst [vmem:[#allocation7 + $0x68] sm:$0xff] %v1571
    %1676 = vst [vmem:[#allocation7 + $0x70] sm:$0xff] %v1658
    %1677 = vst [vmem:[#allocation7 + $0x78] sm:$0xff] %v1660
    // Predicated region
    $region22: #{forward.1} parent=1 // pred_check
      _
    $region23: #{forward.1} parent=1 // pred_check_branch
      %1679 = sbr.rel (0) target = $region25
    $region24: #{forward.1} parent=1 // pred_region
      %s1681 = ssub.s32 2048, 2048
      %1682 = vsyncadd [#allocation4], %s1681
      %s1683 = sshll.u32 [#allocation7], 4
      %s1684 = int_to_ptr.vmem [resolvable:$true] %s1683
      %1689 = dma.vmem_to_hbm [thread:$0]  %s1684, 2048, %s3, [#allocation4], 512, 512, 32
    $region25: #{forward.1} parent=1 // pred_fallthru
      _
    // Predicated region
    $region26: #{forward.1} parent=1 // pred_check
      _
    $region27: #{forward.1} parent=1 // pred_check_branch
      %1691 = sbr.rel (0) target = $region29
    $region28: #{forward.1} parent=1 // pred_region
      %1692 = dma.done [#allocation4], 2048
    $region29: #{forward.1} parent=1 // pred_fallthru
      _
    %1693 = vsyncpa [#allocation3], 1
    %1694 = vsyncpa [#allocation6], 1
    %1695 = vsyncpa [#allocation4], 1

</llo_original>
